<compile_context>
chip_gen: v7x
topology: tpu7x:2x2x1
jax: 0.10.0
libtpu: 0.0.40
codegen_flags: <defaults>
</compile_context>

<pallas_src>
import jax
import jax.numpy as jnp
from jax import lax
from jax.experimental import pallas as pl
from jax.experimental.pallas import tpu as pltpu


# ---------------------------------------------------------------------------
# Kernel 1: one fused bidirectional LSTM layer.
#   x:(S,D)
#   wih_cat:(D,8H)  = [W_ih_fwd^T | W_ih_bwd^T]
#   whh_cat:(H,8H)  = [W_hh_fwd^T | W_hh_bwd^T]
#   b_cat  :(1,8H)  = [b_ih_fwd+b_hh_fwd | b_ih_bwd+b_hh_bwd]
#   out    :(S,2H)  = [fwd | bwd]  (bwd already placed at its source position)
#   PyTorch gate order: i, f, g, o.
# ---------------------------------------------------------------------------
def _bilstm_kernel(x_ref, wih_ref, whh_ref, b_ref, out_ref, xp_ref):
    S = x_ref.shape[0]
    H = whh_ref.shape[0]
    G = 4 * H
    TB = 8                        # timestep block: unrolled + blocked stores

    # (1) Input projection for BOTH directions and ALL timesteps: one MXU matmul.
    xp_ref[...] = jnp.dot(x_ref[...], wih_ref[...],
                          preferred_element_type=jnp.float32) + b_ref[...]

    # Recurrent weights are loop-invariant: load once, keep in vregs.
    whh = whh_ref[...]            # (H, 8H)

    def one_step(t_f, h2, c2):
        # h2/c2: (2, H); row 0 = forward state, row 1 = backward state.
        t_b = S - 1 - t_f
        # One 2-row recurrent matmul covers both directions.
        rec = jnp.dot(h2, whh, preferred_element_type=jnp.float32)      # (2, 8H)
        g_f = xp_ref[pl.ds(t_f, 1), pl.ds(0, G)] + rec[0:1, 0:G]         # (1, 4H)
        g_b = xp_ref[pl.ds(t_b, 1), pl.ds(G, G)] + rec[1:2, G:2 * G]     # (1, 4H)
        gates = jnp.concatenate([g_f, g_b], axis=0)                      # (2, 4H)
        i = jax.nn.sigmoid(gates[:, 0:H])
        f = jax.nn.sigmoid(gates[:, H:2 * H])
        g = jnp.tanh(gates[:, 2 * H:3 * H])
        o = jax.nn.sigmoid(gates[:, 3 * H:4 * H])
        c2 = f * c2 + i * g
        h2 = o * jnp.tanh(c2)
        return h2, c2

    n_blk = S // TB
    rem = S - n_blk * TB
    aligned = rem == 0            # static

    def block_body(b, carry):
        h2, c2 = carry
        rows_f, rows_b = [], []
        for k in range(TB):       # fully unrolled inner 8 steps (LLO visibility)
            h2, c2 = one_step(b * TB + k, h2, c2)
            rows_f.append(h2[0:1, :])
            rows_b.append(h2[1:2, :])
        fwd_blk = jnp.concatenate(rows_f, axis=0)          # (TB, H), rows b*TB..b*TB+7
        bwd_blk = jnp.concatenate(rows_b[::-1], axis=0)    # (TB, H), ascending positions
        row_f = pl.multiple_of(b * TB, TB)
        out_ref[pl.ds(row_f, TB), pl.ds(0, H)] = fwd_blk
        if aligned:
            row_b = pl.multiple_of(S - TB - b * TB, TB)
            out_ref[pl.ds(row_b, TB), pl.ds(H, H)] = bwd_blk
        else:
            # Unaligned backward block start: fall back to per-row stores.
            for k in range(TB):
                out_ref[pl.ds(S - 1 - (b * TB + k), 1), pl.ds(H, H)] = rows_b[k]
        return (h2, c2)

    carry = (jnp.zeros((2, H), jnp.float32), jnp.zeros((2, H), jnp.float32))
    carry = lax.fori_loop(0, n_blk, block_body, carry)

    # Static tail for S not divisible by 8 (per-row stores).
    h2, c2 = carry
    for k in range(rem):
        t = n_blk * TB + k
        h2, c2 = one_step(t, h2, c2)
        out_ref[pl.ds(t, 1), pl.ds(0, H)] = h2[0:1, :]
        out_ref[pl.ds(S - 1 - t, 1), pl.ds(H, H)] = h2[1:2, :]


def bilstm_layer(x, wih_cat, whh_cat, b_cat):
    S = x.shape[0]
    H = whh_cat.shape[0]
    return pl.pallas_call(
        _bilstm_kernel,
        out_shape=jax.ShapeDtypeStruct((S, 2 * H), jnp.float32),
        scratch_shapes=[pltpu.VMEM((S, 8 * H), jnp.float32)],   # input projections
    )(x, wih_cat, whh_cat, b_cat)


# ---------------------------------------------------------------------------
# Kernel 2: fused mlp_h / mlp_m projection (one matmul, two outputs).
#   lstm:(S,2H)  w_hm:(2H,2M)=[Wh^T|Wm^T]  b_hm:(1,2M)  ->  h_out:(S,M), m_out:(S,M)
# ---------------------------------------------------------------------------
def _mlp_proj_kernel(lstm_ref, w_ref, b_ref, h_ref, m_ref):
    M = h_ref.shape[1]
    p = jnp.dot(lstm_ref[...], w_ref[...],
                preferred_element_type=jnp.float32) + b_ref[...]      # (S, 2M)
    h_ref[...] = p[:, 0:M]
    m_ref[...] = p[:, M:2 * M]


def mlp_proj(lstm_out, w_hm, b_hm):
    S = lstm_out.shape[0]
    M = w_hm.shape[1] // 2
    return pl.pallas_call(
        _mlp_proj_kernel,
        out_shape=(jax.ShapeDtypeStruct((S, M), jnp.float32),
                   jax.ShapeDtypeStruct((S, M), jnp.float32)),
    )(lstm_out, w_hm, b_hm)


# ---------------------------------------------------------------------------
# Kernel 3: tiled biaffine scores.
#   scores[i, j] = wf . tanh(h_out[i] + m_out[j]) + bf
#   Grid over (i_block, j_block) keeps the tanh intermediate at (TI,TJ,M).
# ---------------------------------------------------------------------------
def _biaffine_kernel(h_ref, m_ref, wf_ref, bf_ref, out_ref):
    t = jnp.tanh(h_ref[...][:, None, :] + m_ref[...][None, :, :])     # (TI, TJ, M)
    w = wf_ref[...][None, :, :]                                       # (1, 1, M)
    # Elementwise-mul + lane reduce kept (vs MXU reshape form) for lowering robustness;
    # this kernel is not the dominant cost of the model.
    out_ref[...] = jnp.sum(t * w, axis=-1) + bf_ref[0]


def biaffine_scores(h_out, m_out, wf, bf):
    S, M = h_out.shape
    TI = S if S <= 64 else 64          # sublane tile (full dim or multiple of 8)
    TJ = S if S <= 128 else 128        # lane tile (full dim or multiple of 128)
    grid = (pl.cdiv(S, TI), pl.cdiv(S, TJ))
    return pl.pallas_call(
        _biaffine_kernel,
        out_shape=jax.ShapeDtypeStruct((S, S), jnp.float32),
        grid=grid,
        in_specs=[
            pl.BlockSpec((TI, M), lambda i, j: (i, 0)),
            pl.BlockSpec((TJ, M), lambda i, j: (j, 0)),
            pl.BlockSpec((1, M), lambda i, j: (0, 0)),
            pl.BlockSpec(memory_space=pltpu.MemorySpace.SMEM),        # bf scalar
        ],
        out_specs=pl.BlockSpec((TI, TJ), lambda i, j: (i, j)),
        compiler_params=pltpu.CompilerParams(
            dimension_semantics=("parallel", "parallel")),
    )(h_out, m_out, wf, bf)


# ---------------------------------------------------------------------------
# Model wrapper (parameter setup + glue).
# ---------------------------------------------------------------------------
def init_params(key, word_vocab, pos_vocab, word_dim, pos_dim, hidden, mlp_dim, layers):
    keys = iter(jax.random.split(key, 64))

    def nrm(shape, scale=0.1):
        return (scale * jax.random.normal(next(keys), shape)).astype(jnp.float32)

    params = {
        "word_emb": nrm((word_vocab, word_dim), 1.0),   # frozen "pretrained" embedding
        "pos_emb": nrm((pos_vocab, pos_dim), 1.0),
        "lstm": [],
        "w_hm": nrm((2 * hidden, 2 * mlp_dim)),   # [Wh^T | Wm^T]
        "b_hm": nrm((1, 2 * mlp_dim)),            # [bh   | bm]
        "wf": nrm((1, mlp_dim)),
        "bf": nrm((1,)),
    }
    in_dim = word_dim + pos_dim
    for _ in range(layers):
        params["lstm"].append({
            "wih_cat": nrm((in_dim, 8 * hidden)),   # [W_ih_fwd^T | W_ih_bwd^T]
            "whh_cat": nrm((hidden, 8 * hidden)),   # [W_hh_fwd^T | W_hh_bwd^T]
            "b_cat": nrm((1, 8 * hidden)),          # [b_fwd | b_bwd] (b_ih + b_hh)
        })
        in_dim = 2 * hidden
    return params


def forward(params, word_idx, pos_idx):
    # word_idx / pos_idx: (1, S) int32  (the `headers` element of the torch tuple is
    # unused by the torch forward, so it is omitted here too)
    # TODO(synk): embedding-table gathers stay in plain JAX (irregular gather, no clean tiled form).
    we = params["word_emb"][word_idx[0]]                  # (S, Dw)  frozen lookup
    pe = params["pos_emb"][pos_idx[0]]                    # (S, Dp)
    x = jnp.concatenate([we, pe], axis=-1)                # (S, Dw+Dp)  == torch cat dim=2

    for layer in params["lstm"]:
        x = bilstm_layer(x, layer["wih_cat"], layer["whh_cat"], layer["b_cat"])  # (S, 2H)

    h_out, m_out = mlp_proj(x, params["w_hm"], params["b_hm"])                   # (S, M) x2
    scores = biaffine_scores(h_out, m_out, params["wf"], params["bf"])           # (S, S)
    return scores[None, :, :]                                                    # (1, S, S)


# ---------------------------------------------------------------------------
# Pure-JAX reference (numerical verification of the kernels).
# ---------------------------------------------------------------------------
def ref_forward(params, word_idx, pos_idx):
    we = params["word_emb"][word_idx[0]]
    pe = params["pos_emb"][pos_idx[0]]
    x = jnp.concatenate([we, pe], axis=-1)

    def run_dir(x, w_ih_t, w_hh_t, b):
        H = w_hh_t.shape[0]

        def step(carry, xt):
            h, c = carry
            gates = xt @ w_ih_t + h @ w_hh_t + b
            i = jax.nn.sigmoid(gates[0:H]); f = jax.nn.sigmoid(gates[H:2 * H])
            g = jnp.tanh(gates[2 * H:3 * H]); o = jax.nn.sigmoid(gates[3 * H:4 * H])
            c = f * c + i * g
            h = o * jnp.tanh(c)
            return (h, c), h

        _, hs = lax.scan(step, (jnp.zeros(H), jnp.zeros(H)), x)
        return hs

    for layer in params["lstm"]:
        G = layer["whh_cat"].shape[1] // 2
        wih_f, wih_b = layer["wih_cat"][:, :G], layer["wih_cat"][:, G:]
        whh_f, whh_b = layer["whh_cat"][:, :G], layer["whh_cat"][:, G:]
        b_f, b_b = layer["b_cat"][0, :G], layer["b_cat"][0, G:]
        fwd = run_dir(x, wih_f, whh_f, b_f)
        bwd = run_dir(x[::-1], wih_b, whh_b, b_b)[::-1]
        x = jnp.concatenate([fwd, bwd], axis=-1)

    M = params["wf"].shape[1]
    h_out = x @ params["w_hm"][:, :M] + params["b_hm"][0, :M]
    m_out = x @ params["w_hm"][:, M:] + params["b_hm"][0, M:]
    t = jnp.tanh(h_out[:, None, :] + m_out[None, :, :])
    scores = jnp.sum(t * params["wf"][0], axis=-1) + params["bf"][0]
    return scores[None]


if __name__ == "__main__":
    # Small shapes consistent with the module's forward pass.
    S = 8
    WORD_VOCAB, POS_VOCAB = 50, 12
    WORD_DIM, POS_DIM, HIDDEN, MLP_DIM, LAYERS = 32, 16, 32, 32, 2

    key = jax.random.PRNGKey(0)
    k_w, k_p, k_params = jax.random.split(key, 3)
    word_idx = jax.random.randint(k_w, (1, S), 0, WORD_VOCAB, dtype=jnp.int32)
    pos_idx = jax.random.randint(k_p, (1, S), 0, POS_VOCAB, dtype=jnp.int32)

    params = init_params(k_params, WORD_VOCAB, POS_VOCAB,
                         WORD_DIM, POS_DIM, HIDDEN, MLP_DIM, LAYERS)

    out = forward(params, word_idx, pos_idx)
    out = jax.block_until_ready(out)

    ref = ref_forward(params, word_idx, pos_idx)
    assert out.shape == (1, S, S), out.shape
    max_err = float(jnp.abs(out - ref).max())
    assert jnp.allclose(out, ref, atol=2e-2, rtol=2e-2), max_err

    print("KERNEL_OK")
</pallas_src>

<mosaic_0001>
module attributes {stable_mosaic.version = 11 : i64} {
  func.func @_bilstm_kernel(%arg0: memref<8x48xf32, #tpu.memory_space<vmem>>, %arg1: memref<48x256xf32, #tpu.memory_space<vmem>>, %arg2: memref<32x256xf32, #tpu.memory_space<vmem>>, %arg3: memref<1x256xf32, #tpu.memory_space<vmem>>, %arg4: memref<8x64xf32, #tpu.memory_space<vmem>>, %arg5: memref<8x256xf32, #tpu.memory_space<vmem>>) attributes {dimension_semantics = [], scalar_prefetch = 0 : i64, scratch_operands = 1 : i64, tpu.core_type = #tpu.core_type<tc>} {
    %c0 = arith.constant 0 : index
    %c0_0 = arith.constant 0 : index
    %0 = vector.load %arg0[%c0, %c0_0] : memref<8x48xf32, #tpu.memory_space<vmem>>, vector<8x48xf32>
    %c0_1 = arith.constant 0 : index
    %c0_2 = arith.constant 0 : index
    %1 = vector.load %arg1[%c0_1, %c0_2] : memref<48x256xf32, #tpu.memory_space<vmem>>, vector<48x256xf32>
    %cst = arith.constant dense<0.000000e+00> : vector<8x256xf32>
    %2 = tpu.matmul %0, %1, %cst {dimension_numbers = #tpu.dot_dimension_numbers<[1], [0], [0], [1], [0, 0, 1, 1], [], []>} : vector<8x48xf32>, vector<48x256xf32>, vector<8x256xf32> -> vector<8x256xf32>
    %c0_3 = arith.constant 0 : index
    %c0_4 = arith.constant 0 : index
    %3 = vector.load %arg3[%c0_3, %c0_4] : memref<1x256xf32, #tpu.memory_space<vmem>>, vector<1x256xf32>
    %4 = vector.broadcast %3 : vector<1x256xf32> to vector<8x256xf32>
    %5 = arith.addf %2, %4 : vector<8x256xf32>
    %c0_5 = arith.constant 0 : index
    %c0_6 = arith.constant 0 : index
    %6 = vector.load %arg5[%c0_5, %c0_6] : memref<8x256xf32, #tpu.memory_space<vmem>>, vector<8x256xf32>
    tpu.vector_store %arg5[%c0_5, %c0_6], %5 {strides = array<i32>} : memref<8x256xf32, #tpu.memory_space<vmem>>, vector<8x256xf32>,
    %c0_7 = arith.constant 0 : index
    %c0_8 = arith.constant 0 : index
    %7 = vector.load %arg2[%c0_7, %c0_8] : memref<32x256xf32, #tpu.memory_space<vmem>>, vector<32x256xf32>
    %cst_9 = arith.constant 0.000000e+00 : f32
    %8 = vector.broadcast %cst_9 : f32 to vector<2x32xf32>
    %cst_10 = arith.constant 0.000000e+00 : f32
    %9 = vector.broadcast %cst_10 : f32 to vector<2x32xf32>
    %c0_i32 = arith.constant 0 : i32
    %c8_i32 = arith.constant 8 : i32
    %10 = arith.muli %c0_i32, %c8_i32 : i32
    %c0_i32_11 = arith.constant 0 : i32
    %11 = arith.addi %10, %c0_i32_11 : i32
    %c7_i32 = arith.constant 7 : i32
    %12 = arith.subi %c7_i32, %11 : i32
    %cst_12 = arith.constant dense<0.000000e+00> : vector<2x256xf32>
    %13 = tpu.matmul %8, %7, %cst_12 {dimension_numbers = #tpu.dot_dimension_numbers<[1], [0], [0], [1], [0, 0, 1, 1], [], []>} : vector<2x32xf32>, vector<32x256xf32>, vector<2x256xf32> -> vector<2x256xf32>
    %14 = arith.index_cast %11 : i32 to index
    %c0_13 = arith.constant 0 : index
    %15 = vector.load %arg5[%14, %c0_13] : memref<8x256xf32, #tpu.memory_space<vmem>>, vector<1x128xf32>
    %16 = vector.extract_strided_slice %13 {offsets = [0, 0], sizes = [1, 128], strides = [1, 1]} : vector<2x256xf32> to vector<1x128xf32>
    %17 = arith.addf %15, %16 : vector<1x128xf32>
    %18 = arith.index_cast %12 : i32 to index
    %c128 = arith.constant 128 : index
    %19 = vector.load %arg5[%18, %c128] : memref<8x256xf32, #tpu.memory_space<vmem>>, vector<1x128xf32>
    %20 = vector.extract_strided_slice %13 {offsets = [1, 128], sizes = [1, 128], strides = [1, 1]} : vector<2x256xf32> to vector<1x128xf32>
    %21 = arith.addf %19, %20 : vector<1x128xf32>
    %22 = tpu.concatenate %17, %21 in 0 : vector<1x128xf32>, vector<1x128xf32> -> vector<2x128xf32>
    %23 = vector.extract_strided_slice %22 {offsets = [0, 0], sizes = [2, 32], strides = [1, 1]} : vector<2x128xf32> to vector<2x32xf32>
    %24 = arith.negf %23 : vector<2x32xf32>
    %25 = math.exp %24 : vector<2x32xf32>
    %cst_14 = arith.constant 1.000000e+00 : f32
    %26 = vector.broadcast %cst_14 : f32 to vector<2x32xf32>
    %27 = arith.addf %26, %25 : vector<2x32xf32>
    %28 = arith.divf %26, %27 : vector<2x32xf32>
    %29 = vector.extract_strided_slice %22 {offsets = [0, 32], sizes = [2, 32], strides = [1, 1]} : vector<2x128xf32> to vector<2x32xf32>
    %30 = arith.negf %29 : vector<2x32xf32>
    %31 = math.exp %30 : vector<2x32xf32>
    %cst_15 = arith.constant 1.000000e+00 : f32
    %32 = vector.broadcast %cst_15 : f32 to vector<2x32xf32>
    %33 = arith.addf %32, %31 : vector<2x32xf32>
    %34 = arith.divf %32, %33 : vector<2x32xf32>
    %35 = vector.extract_strided_slice %22 {offsets = [0, 64], sizes = [2, 32], strides = [1, 1]} : vector<2x128xf32> to vector<2x32xf32>
    %36 = math.tanh %35 : vector<2x32xf32>
    %37 = vector.extract_strided_slice %22 {offsets = [0, 96], sizes = [2, 32], strides = [1, 1]} : vector<2x128xf32> to vector<2x32xf32>
    %38 = arith.negf %37 : vector<2x32xf32>
    %39 = math.exp %38 : vector<2x32xf32>
    %cst_16 = arith.constant 1.000000e+00 : f32
    %40 = vector.broadcast %cst_16 : f32 to vector<2x32xf32>
    %41 = arith.addf %40, %39 : vector<2x32xf32>
    %42 = arith.divf %40, %41 : vector<2x32xf32>
    %43 = arith.mulf %34, %9 : vector<2x32xf32>
    %44 = arith.mulf %28, %36 : vector<2x32xf32>
    %45 = arith.addf %43, %44 : vector<2x32xf32>
    %46 = math.tanh %45 : vector<2x32xf32>
    %47 = arith.mulf %42, %46 : vector<2x32xf32>
    %48 = vector.extract_strided_slice %47 {offsets = [0, 0], sizes = [1, 32], strides = [1, 1]} : vector<2x32xf32> to vector<1x32xf32>
    %49 = vector.extract_strided_slice %47 {offsets = [1, 0], sizes = [1, 32], strides = [1, 1]} : vector<2x32xf32> to vector<1x32xf32>
    %c8_i32_17 = arith.constant 8 : i32
    %50 = arith.muli %c0_i32, %c8_i32_17 : i32
    %c1_i32 = arith.constant 1 : i32
    %51 = arith.addi %50, %c1_i32 : i32
    %c7_i32_18 = arith.constant 7 : i32
    %52 = arith.subi %c7_i32_18, %51 : i32
    %cst_19 = arith.constant dense<0.000000e+00> : vector<2x256xf32>
    %53 = tpu.matmul %47, %7, %cst_19 {dimension_numbers = #tpu.dot_dimension_numbers<[1], [0], [0], [1], [0, 0, 1, 1], [], []>} : vector<2x32xf32>, vector<32x256xf32>, vector<2x256xf32> -> vector<2x256xf32>
    %54 = arith.index_cast %51 : i32 to index
    %c0_20 = arith.constant 0 : index
    %55 = vector.load %arg5[%54, %c0_20] : memref<8x256xf32, #tpu.memory_space<vmem>>, vector<1x128xf32>
    %56 = vector.extract_strided_slice %53 {offsets = [0, 0], sizes = [1, 128], strides = [1, 1]} : vector<2x256xf32> to vector<1x128xf32>
    %57 = arith.addf %55, %56 : vector<1x128xf32>
    %58 = arith.index_cast %52 : i32 to index
    %c128_21 = arith.constant 128 : index
    %59 = vector.load %arg5[%58, %c128_21] : memref<8x256xf32, #tpu.memory_space<vmem>>, vector<1x128xf32>
    %60 = vector.extract_strided_slice %53 {offsets = [1, 128], sizes = [1, 128], strides = [1, 1]} : vector<2x256xf32> to vector<1x128xf32>
    %61 = arith.addf %59, %60 : vector<1x128xf32>
    %62 = tpu.concatenate %57, %61 in 0 : vector<1x128xf32>, vector<1x128xf32> -> vector<2x128xf32>
    %63 = vector.extract_strided_slice %62 {offsets = [0, 0], sizes = [2, 32], strides = [1, 1]} : vector<2x128xf32> to vector<2x32xf32>
    %64 = arith.negf %63 : vector<2x32xf32>
    %65 = math.exp %64 : vector<2x32xf32>
    %cst_22 = arith.constant 1.000000e+00 : f32
    %66 = vector.broadcast %cst_22 : f32 to vector<2x32xf32>
    %67 = arith.addf %66, %65 : vector<2x32xf32>
    %68 = arith.divf %66, %67 : vector<2x32xf32>
    %69 = vector.extract_strided_slice %62 {offsets = [0, 32], sizes = [2, 32], strides = [1, 1]} : vector<2x128xf32> to vector<2x32xf32>
    %70 = arith.negf %69 : vector<2x32xf32>
    %71 = math.exp %70 : vector<2x32xf32>
    %cst_23 = arith.constant 1.000000e+00 : f32
    %72 = vector.broadcast %cst_23 : f32 to vector<2x32xf32>
    %73 = arith.addf %72, %71 : vector<2x32xf32>
    %74 = arith.divf %72, %73 : vector<2x32xf32>
    %75 = vector.extract_strided_slice %62 {offsets = [0, 64], sizes = [2, 32], strides = [1, 1]} : vector<2x128xf32> to vector<2x32xf32>
    %76 = math.tanh %75 : vector<2x32xf32>
    %77 = vector.extract_strided_slice %62 {offsets = [0, 96], sizes = [2, 32], strides = [1, 1]} : vector<2x128xf32> to vector<2x32xf32>
    %78 = arith.negf %77 : vector<2x32xf32>
    %79 = math.exp %78 : vector<2x32xf32>
    %cst_24 = arith.constant 1.000000e+00 : f32
    %80 = vector.broadcast %cst_24 : f32 to vector<2x32xf32>
    %81 = arith.addf %80, %79 : vector<2x32xf32>
    %82 = arith.divf %80, %81 : vector<2x32xf32>
    %83 = arith.mulf %74, %45 : vector<2x32xf32>
    %84 = arith.mulf %68, %76 : vector<2x32xf32>
    %85 = arith.addf %83, %84 : vector<2x32xf32>
    %86 = math.tanh %85 : vector<2x32xf32>
    %87 = arith.mulf %82, %86 : vector<2x32xf32>
    %88 = vector.extract_strided_slice %87 {offsets = [0, 0], sizes = [1, 32], strides = [1, 1]} : vector<2x32xf32> to vector<1x32xf32>
    %89 = vector.extract_strided_slice %87 {offsets = [1, 0], sizes = [1, 32], strides = [1, 1]} : vector<2x32xf32> to vector<1x32xf32>
    %c8_i32_25 = arith.constant 8 : i32
    %90 = arith.muli %c0_i32, %c8_i32_25 : i32
    %c2_i32 = arith.constant 2 : i32
    %91 = arith.addi %90, %c2_i32 : i32
    %c7_i32_26 = arith.constant 7 : i32
    %92 = arith.subi %c7_i32_26, %91 : i32
    %cst_27 = arith.constant dense<0.000000e+00> : vector<2x256xf32>
    %93 = tpu.matmul %87, %7, %cst_27 {dimension_numbers = #tpu.dot_dimension_numbers<[1], [0], [0], [1], [0, 0, 1, 1], [], []>} : vector<2x32xf32>, vector<32x256xf32>, vector<2x256xf32> -> vector<2x256xf32>
    %94 = arith.index_cast %91 : i32 to index
    %c0_28 = arith.constant 0 : index
    %95 = vector.load %arg5[%94, %c0_28] : memref<8x256xf32, #tpu.memory_space<vmem>>, vector<1x128xf32>
    %96 = vector.extract_strided_slice %93 {offsets = [0, 0], sizes = [1, 128], strides = [1, 1]} : vector<2x256xf32> to vector<1x128xf32>
    %97 = arith.addf %95, %96 : vector<1x128xf32>
    %98 = arith.index_cast %92 : i32 to index
    %c128_29 = arith.constant 128 : index
    %99 = vector.load %arg5[%98, %c128_29] : memref<8x256xf32, #tpu.memory_space<vmem>>, vector<1x128xf32>
    %100 = vector.extract_strided_slice %93 {offsets = [1, 128], sizes = [1, 128], strides = [1, 1]} : vector<2x256xf32> to vector<1x128xf32>
    %101 = arith.addf %99, %100 : vector<1x128xf32>
    %102 = tpu.concatenate %97, %101 in 0 : vector<1x128xf32>, vector<1x128xf32> -> vector<2x128xf32>
    %103 = vector.extract_strided_slice %102 {offsets = [0, 0], sizes = [2, 32], strides = [1, 1]} : vector<2x128xf32> to vector<2x32xf32>
    %104 = arith.negf %103 : vector<2x32xf32>
    %105 = math.exp %104 : vector<2x32xf32>
    %cst_30 = arith.constant 1.000000e+00 : f32
    %106 = vector.broadcast %cst_30 : f32 to vector<2x32xf32>
    %107 = arith.addf %106, %105 : vector<2x32xf32>
    %108 = arith.divf %106, %107 : vector<2x32xf32>
    %109 = vector.extract_strided_slice %102 {offsets = [0, 32], sizes = [2, 32], strides = [1, 1]} : vector<2x128xf32> to vector<2x32xf32>
    %110 = arith.negf %109 : vector<2x32xf32>
    %111 = math.exp %110 : vector<2x32xf32>
    %cst_31 = arith.constant 1.000000e+00 : f32
    %112 = vector.broadcast %cst_31 : f32 to vector<2x32xf32>
    %113 = arith.addf %112, %111 : vector<2x32xf32>
    %114 = arith.divf %112, %113 : vector<2x32xf32>
    %115 = vector.extract_strided_slice %102 {offsets = [0, 64], sizes = [2, 32], strides = [1, 1]} : vector<2x128xf32> to vector<2x32xf32>
    %116 = math.tanh %115 : vector<2x32xf32>
    %117 = vector.extract_strided_slice %102 {offsets = [0, 96], sizes = [2, 32], strides = [1, 1]} : vector<2x128xf32> to vector<2x32xf32>
    %118 = arith.negf %117 : vector<2x32xf32>
    %119 = math.exp %118 : vector<2x32xf32>
    %cst_32 = arith.constant 1.000000e+00 : f32
    %120 = vector.broadcast %cst_32 : f32 to vector<2x32xf32>
    %121 = arith.addf %120, %119 : vector<2x32xf32>
    %122 = arith.divf %120, %121 : vector<2x32xf32>
    %123 = arith.mulf %114, %85 : vector<2x32xf32>
    %124 = arith.mulf %108, %116 : vector<2x32xf32>
    %125 = arith.addf %123, %124 : vector<2x32xf32>
    %126 = math.tanh %125 : vector<2x32xf32>
    %127 = arith.mulf %122, %126 : vector<2x32xf32>
    %128 = vector.extract_strided_slice %127 {offsets = [0, 0], sizes = [1, 32], strides = [1, 1]} : vector<2x32xf32> to vector<1x32xf32>
    %129 = vector.extract_strided_slice %127 {offsets = [1, 0], sizes = [1, 32], strides = [1, 1]} : vector<2x32xf32> to vector<1x32xf32>
    %c8_i32_33 = arith.constant 8 : i32
    %130 = arith.muli %c0_i32, %c8_i32_33 : i32
    %c3_i32 = arith.constant 3 : i32
    %131 = arith.addi %130, %c3_i32 : i32
    %c7_i32_34 = arith.constant 7 : i32
    %132 = arith.subi %c7_i32_34, %131 : i32
    %cst_35 = arith.constant dense<0.000000e+00> : vector<2x256xf32>
    %133 = tpu.matmul %127, %7, %cst_35 {dimension_numbers = #tpu.dot_dimension_numbers<[1], [0], [0], [1], [0, 0, 1, 1], [], []>} : vector<2x32xf32>, vector<32x256xf32>, vector<2x256xf32> -> vector<2x256xf32>
    %134 = arith.index_cast %131 : i32 to index
    %c0_36 = arith.constant 0 : index
    %135 = vector.load %arg5[%134, %c0_36] : memref<8x256xf32, #tpu.memory_space<vmem>>, vector<1x128xf32>
    %136 = vector.extract_strided_slice %133 {offsets = [0, 0], sizes = [1, 128], strides = [1, 1]} : vector<2x256xf32> to vector<1x128xf32>
    %137 = arith.addf %135, %136 : vector<1x128xf32>
    %138 = arith.index_cast %132 : i32 to index
    %c128_37 = arith.constant 128 : index
    %139 = vector.load %arg5[%138, %c128_37] : memref<8x256xf32, #tpu.memory_space<vmem>>, vector<1x128xf32>
    %140 = vector.extract_strided_slice %133 {offsets = [1, 128], sizes = [1, 128], strides = [1, 1]} : vector<2x256xf32> to vector<1x128xf32>
    %141 = arith.addf %139, %140 : vector<1x128xf32>
    %142 = tpu.concatenate %137, %141 in 0 : vector<1x128xf32>, vector<1x128xf32> -> vector<2x128xf32>
    %143 = vector.extract_strided_slice %142 {offsets = [0, 0], sizes = [2, 32], strides = [1, 1]} : vector<2x128xf32> to vector<2x32xf32>
    %144 = arith.negf %143 : vector<2x32xf32>
    %145 = math.exp %144 : vector<2x32xf32>
    %cst_38 = arith.constant 1.000000e+00 : f32
    %146 = vector.broadcast %cst_38 : f32 to vector<2x32xf32>
    %147 = arith.addf %146, %145 : vector<2x32xf32>
    %148 = arith.divf %146, %147 : vector<2x32xf32>
    %149 = vector.extract_strided_slice %142 {offsets = [0, 32], sizes = [2, 32], strides = [1, 1]} : vector<2x128xf32> to vector<2x32xf32>
    %150 = arith.negf %149 : vector<2x32xf32>
    %151 = math.exp %150 : vector<2x32xf32>
    %cst_39 = arith.constant 1.000000e+00 : f32
    %152 = vector.broadcast %cst_39 : f32 to vector<2x32xf32>
    %153 = arith.addf %152, %151 : vector<2x32xf32>
    %154 = arith.divf %152, %153 : vector<2x32xf32>
    %155 = vector.extract_strided_slice %142 {offsets = [0, 64], sizes = [2, 32], strides = [1, 1]} : vector<2x128xf32> to vector<2x32xf32>
    %156 = math.tanh %155 : vector<2x32xf32>
    %157 = vector.extract_strided_slice %142 {offsets = [0, 96], sizes = [2, 32], strides = [1, 1]} : vector<2x128xf32> to vector<2x32xf32>
    %158 = arith.negf %157 : vector<2x32xf32>
    %159 = math.exp %158 : vector<2x32xf32>
    %cst_40 = arith.constant 1.000000e+00 : f32
    %160 = vector.broadcast %cst_40 : f32 to vector<2x32xf32>
    %161 = arith.addf %160, %159 : vector<2x32xf32>
    %162 = arith.divf %160, %161 : vector<2x32xf32>
    %163 = arith.mulf %154, %125 : vector<2x32xf32>
    %164 = arith.mulf %148, %156 : vector<2x32xf32>
    %165 = arith.addf %163, %164 : vector<2x32xf32>
    %166 = math.tanh %165 : vector<2x32xf32>
    %167 = arith.mulf %162, %166 : vector<2x32xf32>
    %168 = vector.extract_strided_slice %167 {offsets = [0, 0], sizes = [1, 32], strides = [1, 1]} : vector<2x32xf32> to vector<1x32xf32>
    %169 = vector.extract_strided_slice %167 {offsets = [1, 0], sizes = [1, 32], strides = [1, 1]} : vector<2x32xf32> to vector<1x32xf32>
    %c8_i32_41 = arith.constant 8 : i32
    %170 = arith.muli %c0_i32, %c8_i32_41 : i32
    %c4_i32 = arith.constant 4 : i32
    %171 = arith.addi %170, %c4_i32 : i32
    %c7_i32_42 = arith.constant 7 : i32
    %172 = arith.subi %c7_i32_42, %171 : i32
    %cst_43 = arith.constant dense<0.000000e+00> : vector<2x256xf32>
    %173 = tpu.matmul %167, %7, %cst_43 {dimension_numbers = #tpu.dot_dimension_numbers<[1], [0], [0], [1], [0, 0, 1, 1], [], []>} : vector<2x32xf32>, vector<32x256xf32>, vector<2x256xf32> -> vector<2x256xf32>
    %174 = arith.index_cast %171 : i32 to index
    %c0_44 = arith.constant 0 : index
    %175 = vector.load %arg5[%174, %c0_44] : memref<8x256xf32, #tpu.memory_space<vmem>>, vector<1x128xf32>
    %176 = vector.extract_strided_slice %173 {offsets = [0, 0], sizes = [1, 128], strides = [1, 1]} : vector<2x256xf32> to vector<1x128xf32>
    %177 = arith.addf %175, %176 : vector<1x128xf32>
    %178 = arith.index_cast %172 : i32 to index
    %c128_45 = arith.constant 128 : index
    %179 = vector.load %arg5[%178, %c128_45] : memref<8x256xf32, #tpu.memory_space<vmem>>, vector<1x128xf32>
    %180 = vector.extract_strided_slice %173 {offsets = [1, 128], sizes = [1, 128], strides = [1, 1]} : vector<2x256xf32> to vector<1x128xf32>
    %181 = arith.addf %179, %180 : vector<1x128xf32>
    %182 = tpu.concatenate %177, %181 in 0 : vector<1x128xf32>, vector<1x128xf32> -> vector<2x128xf32>
    %183 = vector.extract_strided_slice %182 {offsets = [0, 0], sizes = [2, 32], strides = [1, 1]} : vector<2x128xf32> to vector<2x32xf32>
    %184 = arith.negf %183 : vector<2x32xf32>
    %185 = math.exp %184 : vector<2x32xf32>
    %cst_46 = arith.constant 1.000000e+00 : f32
    %186 = vector.broadcast %cst_46 : f32 to vector<2x32xf32>
    %187 = arith.addf %186, %185 : vector<2x32xf32>
    %188 = arith.divf %186, %187 : vector<2x32xf32>
    %189 = vector.extract_strided_slice %182 {offsets = [0, 32], sizes = [2, 32], strides = [1, 1]} : vector<2x128xf32> to vector<2x32xf32>
    %190 = arith.negf %189 : vector<2x32xf32>
    %191 = math.exp %190 : vector<2x32xf32>
    %cst_47 = arith.constant 1.000000e+00 : f32
    %192 = vector.broadcast %cst_47 : f32 to vector<2x32xf32>
    %193 = arith.addf %192, %191 : vector<2x32xf32>
    %194 = arith.divf %192, %193 : vector<2x32xf32>
    %195 = vector.extract_strided_slice %182 {offsets = [0, 64], sizes = [2, 32], strides = [1, 1]} : vector<2x128xf32> to vector<2x32xf32>
    %196 = math.tanh %195 : vector<2x32xf32>
    %197 = vector.extract_strided_slice %182 {offsets = [0, 96], sizes = [2, 32], strides = [1, 1]} : vector<2x128xf32> to vector<2x32xf32>
    %198 = arith.negf %197 : vector<2x32xf32>
    %199 = math.exp %198 : vector<2x32xf32>
    %cst_48 = arith.constant 1.000000e+00 : f32
    %200 = vector.broadcast %cst_48 : f32 to vector<2x32xf32>
    %201 = arith.addf %200, %199 : vector<2x32xf32>
    %202 = arith.divf %200, %201 : vector<2x32xf32>
    %203 = arith.mulf %194, %165 : vector<2x32xf32>
    %204 = arith.mulf %188, %196 : vector<2x32xf32>
    %205 = arith.addf %203, %204 : vector<2x32xf32>
    %206 = math.tanh %205 : vector<2x32xf32>
    %207 = arith.mulf %202, %206 : vector<2x32xf32>
    %208 = vector.extract_strided_slice %207 {offsets = [0, 0], sizes = [1, 32], strides = [1, 1]} : vector<2x32xf32> to vector<1x32xf32>
    %209 = vector.extract_strided_slice %207 {offsets = [1, 0], sizes = [1, 32], strides = [1, 1]} : vector<2x32xf32> to vector<1x32xf32>
    %c8_i32_49 = arith.constant 8 : i32
    %210 = arith.muli %c0_i32, %c8_i32_49 : i32
    %c5_i32 = arith.constant 5 : i32
    %211 = arith.addi %210, %c5_i32 : i32
    %c7_i32_50 = arith.constant 7 : i32
    %212 = arith.subi %c7_i32_50, %211 : i32
    %cst_51 = arith.constant dense<0.000000e+00> : vector<2x256xf32>
    %213 = tpu.matmul %207, %7, %cst_51 {dimension_numbers = #tpu.dot_dimension_numbers<[1], [0], [0], [1], [0, 0, 1, 1], [], []>} : vector<2x32xf32>, vector<32x256xf32>, vector<2x256xf32> -> vector<2x256xf32>
    %214 = arith.index_cast %211 : i32 to index
    %c0_52 = arith.constant 0 : index
    %215 = vector.load %arg5[%214, %c0_52] : memref<8x256xf32, #tpu.memory_space<vmem>>, vector<1x128xf32>
    %216 = vector.extract_strided_slice %213 {offsets = [0, 0], sizes = [1, 128], strides = [1, 1]} : vector<2x256xf32> to vector<1x128xf32>
    %217 = arith.addf %215, %216 : vector<1x128xf32>
    %218 = arith.index_cast %212 : i32 to index
    %c128_53 = arith.constant 128 : index
    %219 = vector.load %arg5[%218, %c128_53] : memref<8x256xf32, #tpu.memory_space<vmem>>, vector<1x128xf32>
    %220 = vector.extract_strided_slice %213 {offsets = [1, 128], sizes = [1, 128], strides = [1, 1]} : vector<2x256xf32> to vector<1x128xf32>
    %221 = arith.addf %219, %220 : vector<1x128xf32>
    %222 = tpu.concatenate %217, %221 in 0 : vector<1x128xf32>, vector<1x128xf32> -> vector<2x128xf32>
    %223 = vector.extract_strided_slice %222 {offsets = [0, 0], sizes = [2, 32], strides = [1, 1]} : vector<2x128xf32> to vector<2x32xf32>
    %224 = arith.negf %223 : vector<2x32xf32>
    %225 = math.exp %224 : vector<2x32xf32>
    %cst_54 = arith.constant 1.000000e+00 : f32
    %226 = vector.broadcast %cst_54 : f32 to vector<2x32xf32>
    %227 = arith.addf %226, %225 : vector<2x32xf32>
    %228 = arith.divf %226, %227 : vector<2x32xf32>
    %229 = vector.extract_strided_slice %222 {offsets = [0, 32], sizes = [2, 32], strides = [1, 1]} : vector<2x128xf32> to vector<2x32xf32>
    %230 = arith.negf %229 : vector<2x32xf32>
    %231 = math.exp %230 : vector<2x32xf32>
    %cst_55 = arith.constant 1.000000e+00 : f32
    %232 = vector.broadcast %cst_55 : f32 to vector<2x32xf32>
    %233 = arith.addf %232, %231 : vector<2x32xf32>
    %234 = arith.divf %232, %233 : vector<2x32xf32>
    %235 = vector.extract_strided_slice %222 {offsets = [0, 64], sizes = [2, 32], strides = [1, 1]} : vector<2x128xf32> to vector<2x32xf32>
    %236 = math.tanh %235 : vector<2x32xf32>
    %237 = vector.extract_strided_slice %222 {offsets = [0, 96], sizes = [2, 32], strides = [1, 1]} : vector<2x128xf32> to vector<2x32xf32>
    %238 = arith.negf %237 : vector<2x32xf32>
    %239 = math.exp %238 : vector<2x32xf32>
    %cst_56 = arith.constant 1.000000e+00 : f32
    %240 = vector.broadcast %cst_56 : f32 to vector<2x32xf32>
    %241 = arith.addf %240, %239 : vector<2x32xf32>
    %242 = arith.divf %240, %241 : vector<2x32xf32>
    %243 = arith.mulf %234, %205 : vector<2x32xf32>
    %244 = arith.mulf %228, %236 : vector<2x32xf32>
    %245 = arith.addf %243, %244 : vector<2x32xf32>
    %246 = math.tanh %245 : vector<2x32xf32>
    %247 = arith.mulf %242, %246 : vector<2x32xf32>
    %248 = vector.extract_strided_slice %247 {offsets = [0, 0], sizes = [1, 32], strides = [1, 1]} : vector<2x32xf32> to vector<1x32xf32>
    %249 = vector.extract_strided_slice %247 {offsets = [1, 0], sizes = [1, 32], strides = [1, 1]} : vector<2x32xf32> to vector<1x32xf32>
    %c8_i32_57 = arith.constant 8 : i32
    %250 = arith.muli %c0_i32, %c8_i32_57 : i32
    %c6_i32 = arith.constant 6 : i32
    %251 = arith.addi %250, %c6_i32 : i32
    %c7_i32_58 = arith.constant 7 : i32
    %252 = arith.subi %c7_i32_58, %251 : i32
    %cst_59 = arith.constant dense<0.000000e+00> : vector<2x256xf32>
    %253 = tpu.matmul %247, %7, %cst_59 {dimension_numbers = #tpu.dot_dimension_numbers<[1], [0], [0], [1], [0, 0, 1, 1], [], []>} : vector<2x32xf32>, vector<32x256xf32>, vector<2x256xf32> -> vector<2x256xf32>
    %254 = arith.index_cast %251 : i32 to index
    %c0_60 = arith.constant 0 : index
    %255 = vector.load %arg5[%254, %c0_60] : memref<8x256xf32, #tpu.memory_space<vmem>>, vector<1x128xf32>
    %256 = vector.extract_strided_slice %253 {offsets = [0, 0], sizes = [1, 128], strides = [1, 1]} : vector<2x256xf32> to vector<1x128xf32>
    %257 = arith.addf %255, %256 : vector<1x128xf32>
    %258 = arith.index_cast %252 : i32 to index
    %c128_61 = arith.constant 128 : index
    %259 = vector.load %arg5[%258, %c128_61] : memref<8x256xf32, #tpu.memory_space<vmem>>, vector<1x128xf32>
    %260 = vector.extract_strided_slice %253 {offsets = [1, 128], sizes = [1, 128], strides = [1, 1]} : vector<2x256xf32> to vector<1x128xf32>
    %261 = arith.addf %259, %260 : vector<1x128xf32>
    %262 = tpu.concatenate %257, %261 in 0 : vector<1x128xf32>, vector<1x128xf32> -> vector<2x128xf32>
    %263 = vector.extract_strided_slice %262 {offsets = [0, 0], sizes = [2, 32], strides = [1, 1]} : vector<2x128xf32> to vector<2x32xf32>
    %264 = arith.negf %263 : vector<2x32xf32>
    %265 = math.exp %264 : vector<2x32xf32>
    %cst_62 = arith.constant 1.000000e+00 : f32
    %266 = vector.broadcast %cst_62 : f32 to vector<2x32xf32>
    %267 = arith.addf %266, %265 : vector<2x32xf32>
    %268 = arith.divf %266, %267 : vector<2x32xf32>
    %269 = vector.extract_strided_slice %262 {offsets = [0, 32], sizes = [2, 32], strides = [1, 1]} : vector<2x128xf32> to vector<2x32xf32>
    %270 = arith.negf %269 : vector<2x32xf32>
    %271 = math.exp %270 : vector<2x32xf32>
    %cst_63 = arith.constant 1.000000e+00 : f32
    %272 = vector.broadcast %cst_63 : f32 to vector<2x32xf32>
    %273 = arith.addf %272, %271 : vector<2x32xf32>
    %274 = arith.divf %272, %273 : vector<2x32xf32>
    %275 = vector.extract_strided_slice %262 {offsets = [0, 64], sizes = [2, 32], strides = [1, 1]} : vector<2x128xf32> to vector<2x32xf32>
    %276 = math.tanh %275 : vector<2x32xf32>
    %277 = vector.extract_strided_slice %262 {offsets = [0, 96], sizes = [2, 32], strides = [1, 1]} : vector<2x128xf32> to vector<2x32xf32>
    %278 = arith.negf %277 : vector<2x32xf32>
    %279 = math.exp %278 : vector<2x32xf32>
    %cst_64 = arith.constant 1.000000e+00 : f32
    %280 = vector.broadcast %cst_64 : f32 to vector<2x32xf32>
    %281 = arith.addf %280, %279 : vector<2x32xf32>
    %282 = arith.divf %280, %281 : vector<2x32xf32>
    %283 = arith.mulf %274, %245 : vector<2x32xf32>
    %284 = arith.mulf %268, %276 : vector<2x32xf32>
    %285 = arith.addf %283, %284 : vector<2x32xf32>
    %286 = math.tanh %285 : vector<2x32xf32>
    %287 = arith.mulf %282, %286 : vector<2x32xf32>
    %288 = vector.extract_strided_slice %287 {offsets = [0, 0], sizes = [1, 32], strides = [1, 1]} : vector<2x32xf32> to vector<1x32xf32>
    %289 = vector.extract_strided_slice %287 {offsets = [1, 0], sizes = [1, 32], strides = [1, 1]} : vector<2x32xf32> to vector<1x32xf32>
    %c8_i32_65 = arith.constant 8 : i32
    %290 = arith.muli %c0_i32, %c8_i32_65 : i32
    %c7_i32_66 = arith.constant 7 : i32
    %291 = arith.addi %290, %c7_i32_66 : i32
    %c7_i32_67 = arith.constant 7 : i32
    %292 = arith.subi %c7_i32_67, %291 : i32
    %cst_68 = arith.constant dense<0.000000e+00> : vector<2x256xf32>
    %293 = tpu.matmul %287, %7, %cst_68 {dimension_numbers = #tpu.dot_dimension_numbers<[1], [0], [0], [1], [0, 0, 1, 1], [], []>} : vector<2x32xf32>, vector<32x256xf32>, vector<2x256xf32> -> vector<2x256xf32>
    %294 = arith.index_cast %291 : i32 to index
    %c0_69 = arith.constant 0 : index
    %295 = vector.load %arg5[%294, %c0_69] : memref<8x256xf32, #tpu.memory_space<vmem>>, vector<1x128xf32>
    %296 = vector.extract_strided_slice %293 {offsets = [0, 0], sizes = [1, 128], strides = [1, 1]} : vector<2x256xf32> to vector<1x128xf32>
    %297 = arith.addf %295, %296 : vector<1x128xf32>
    %298 = arith.index_cast %292 : i32 to index
    %c128_70 = arith.constant 128 : index
    %299 = vector.load %arg5[%298, %c128_70] : memref<8x256xf32, #tpu.memory_space<vmem>>, vector<1x128xf32>
    %300 = vector.extract_strided_slice %293 {offsets = [1, 128], sizes = [1, 128], strides = [1, 1]} : vector<2x256xf32> to vector<1x128xf32>
    %301 = arith.addf %299, %300 : vector<1x128xf32>
    %302 = tpu.concatenate %297, %301 in 0 : vector<1x128xf32>, vector<1x128xf32> -> vector<2x128xf32>
    %303 = vector.extract_strided_slice %302 {offsets = [0, 0], sizes = [2, 32], strides = [1, 1]} : vector<2x128xf32> to vector<2x32xf32>
    %304 = arith.negf %303 : vector<2x32xf32>
    %305 = math.exp %304 : vector<2x32xf32>
    %cst_71 = arith.constant 1.000000e+00 : f32
    %306 = vector.broadcast %cst_71 : f32 to vector<2x32xf32>
    %307 = arith.addf %306, %305 : vector<2x32xf32>
    %308 = arith.divf %306, %307 : vector<2x32xf32>
    %309 = vector.extract_strided_slice %302 {offsets = [0, 32], sizes = [2, 32], strides = [1, 1]} : vector<2x128xf32> to vector<2x32xf32>
    %310 = arith.negf %309 : vector<2x32xf32>
    %311 = math.exp %310 : vector<2x32xf32>
    %cst_72 = arith.constant 1.000000e+00 : f32
    %312 = vector.broadcast %cst_72 : f32 to vector<2x32xf32>
    %313 = arith.addf %312, %311 : vector<2x32xf32>
    %314 = arith.divf %312, %313 : vector<2x32xf32>
    %315 = vector.extract_strided_slice %302 {offsets = [0, 64], sizes = [2, 32], strides = [1, 1]} : vector<2x128xf32> to vector<2x32xf32>
    %316 = math.tanh %315 : vector<2x32xf32>
    %317 = vector.extract_strided_slice %302 {offsets = [0, 96], sizes = [2, 32], strides = [1, 1]} : vector<2x128xf32> to vector<2x32xf32>
    %318 = arith.negf %317 : vector<2x32xf32>
    %319 = math.exp %318 : vector<2x32xf32>
    %cst_73 = arith.constant 1.000000e+00 : f32
    %320 = vector.broadcast %cst_73 : f32 to vector<2x32xf32>
    %321 = arith.addf %320, %319 : vector<2x32xf32>
    %322 = arith.divf %320, %321 : vector<2x32xf32>
    %323 = arith.mulf %314, %285 : vector<2x32xf32>
    %324 = arith.mulf %308, %316 : vector<2x32xf32>
    %325 = arith.addf %323, %324 : vector<2x32xf32>
    %326 = math.tanh %325 : vector<2x32xf32>
    %327 = arith.mulf %322, %326 : vector<2x32xf32>
    %328 = vector.extract_strided_slice %327 {offsets = [0, 0], sizes = [1, 32], strides = [1, 1]} : vector<2x32xf32> to vector<1x32xf32>
    %329 = vector.extract_strided_slice %327 {offsets = [1, 0], sizes = [1, 32], strides = [1, 1]} : vector<2x32xf32> to vector<1x32xf32>
    %330 = tpu.concatenate %48, %88, %128, %168, %208, %248, %288, %328 in 0 : vector<1x32xf32>, vector<1x32xf32>, vector<1x32xf32>, vector<1x32xf32>, vector<1x32xf32>, vector<1x32xf32>, vector<1x32xf32>, vector<1x32xf32> -> vector<8x32xf32>
    %331 = tpu.concatenate %329, %289, %249, %209, %169, %129, %89, %49 in 0 : vector<1x32xf32>, vector<1x32xf32>, vector<1x32xf32>, vector<1x32xf32>, vector<1x32xf32>, vector<1x32xf32>, vector<1x32xf32>, vector<1x32xf32> -> vector<8x32xf32>
    %c8_i32_74 = arith.constant 8 : i32
    %332 = arith.muli %c0_i32, %c8_i32_74 : i32
    %333 = tpu.assume_multiple %332, 8 : i32
    %334 = arith.index_cast %333 : i32 to index
    %c0_75 = arith.constant 0 : index
    %335 = vector.load %arg4[%334, %c0_75] : memref<8x64xf32, #tpu.memory_space<vmem>>, vector<8x32xf32>
    tpu.vector_store %arg4[%334, %c0_75], %330 {strides = array<i32>} : memref<8x64xf32, #tpu.memory_space<vmem>>, vector<8x32xf32>,
    %c8_i32_76 = arith.constant 8 : i32
    %336 = arith.muli %c0_i32, %c8_i32_76 : i32
    %c0_i32_77 = arith.constant 0 : i32
    %337 = arith.subi %c0_i32_77, %336 : i32
    %338 = tpu.assume_multiple %337, 8 : i32
    %339 = arith.index_cast %338 : i32 to index
    %c32 = arith.constant 32 : index
    %340 = vector.load %arg4[%339, %c32] : memref<8x64xf32, #tpu.memory_space<vmem>>, vector<8x32xf32>
    tpu.vector_store %arg4[%339, %c32], %331 {strides = array<i32>} : memref<8x64xf32, #tpu.memory_space<vmem>>, vector<8x32xf32>,
    %c1_i32_78 = arith.constant 1 : i32
    return
  }
}

</mosaic_0001>

<llo_original>
// kernel: tpu_custom_call.1
$region0: #{tpu_custom_call.1}
  #allocation0 [shape = 'u32[]', space=smem, size = 0x4, offset = 0x4, fixed_abs, tag = 'smem constant byte address 0x4 - core index']
  #allocation1 [shape = 'u32[144,128]{1,0:T(1,128)}', space=vmem, size = 0x12000, scoped, tag = 'internal scratch']
  #allocation2 [shape = 'f32[8,256]{1,0:T(8,128)}', space=vmem, size = 0x2000, scoped, tag = 'scratch operand']
  %s0 = inlined_call_operand.hbm [shape: f32[8,48], index: 0, kind: input, shape index: {}]
  %s1 = inlined_call_operand.hbm [shape: f32[48,256], index: 1, kind: input, shape index: {}]
  %s2 = inlined_call_operand.hbm [shape: f32[32,256], index: 2, kind: input, shape index: {}]
  %s3 = inlined_call_operand.vmem [shape: f32[1,256], index: 3, kind: input, shape index: {}]
  %s4 = inlined_call_operand.hbm [shape: f32[8,64], index: 4, kind: output, shape index: {}]
  %s5 = sld [smem:[#allocation0]]
  $region38: #{tpu_custom_call.1} parent=0
    _
  %s7 = ssub.s32 1, %s5
  %s8 = scalar_select 0, %s7, %s5
  $region1: #{tpu_custom_call.1} parent=0
    #allocation3 [shape = 'u8[4096]{0}', space=vmem, size = 0x1000, scoped, tag = 'input window, operand 0, single buffered']
    #allocation4 [shape = 's32[1]{0}', space=sflag, size = 0x4, scoped, tag = 'scoped memory for tpu_custom_call.1']
    #allocation5 [shape = 's32[1]{0}', space=sflag, size = 0x4, scoped, tag = 'scoped memory for tpu_custom_call.1']
    #allocation6 [shape = 'u8[49152]{0}', space=vmem, size = 0xc000, scoped, tag = 'input window, operand 1, single buffered']
    #allocation7 [shape = 's32[1]{0}', space=sflag, size = 0x4, scoped, tag = 'scoped memory for tpu_custom_call.1']
    #allocation8 [shape = 'u8[32768]{0}', space=vmem, size = 0x8000, scoped, tag = 'input window, operand 2, single buffered']
    #allocation9 [shape = 'u8[4096]{0}', space=vmem, size = 0x1000, scoped, tag = 'output window, operand 0, single buffered']
    %9 = vsyncpa [#allocation4], 0
    %10 = vsyncpa [#allocation7], 0
    %11 = vsyncpa [#allocation5], 0
    // Predicated region
    $region2: #{tpu_custom_call.1} parent=1 // pred_check
      _
    $region3: #{tpu_custom_call.1} parent=1 // pred_check_branch
      %13 = sbr.rel (0) target = $region5
    $region4: #{tpu_custom_call.1} parent=1 // pred_region
      %s15 = ssub.s32 128, 128
      %16 = vsyncadd [#allocation4], %s15
      %s18 = sshll.u32 [#allocation3], 4
      %s19 = int_to_ptr.vmem [resolvable:$true] %s18
      %21 = dma.hbm_to_vmem [thread:$0]  %s0, 128, %s19, [#allocation4]
    $region5: #{tpu_custom_call.1} parent=1 // pred_fallthru
      _
    // Predicated region
    $region6: #{tpu_custom_call.1} parent=1 // pred_check
      _
    $region7: #{tpu_custom_call.1} parent=1 // pred_check_branch
      %23 = sbr.rel (0) target = $region9
    $region8: #{tpu_custom_call.1} parent=1 // pred_region
      %s25 = ssub.s32 1536, 1536
      %26 = vsyncadd [#allocation7], %s25
      %s27 = sshll.u32 [#allocation6], 4
      %s28 = int_to_ptr.vmem [resolvable:$true] %s27
      %33 = dma.hbm_to_vmem [thread:$0]  %s1, 1536, %s28, [#allocation7], 256, 256, 16
    $region9: #{tpu_custom_call.1} parent=1 // pred_fallthru
      _
    // Predicated region
    $region10: #{tpu_custom_call.1} parent=1 // pred_check
      _
    $region11: #{tpu_custom_call.1} parent=1 // pred_check_branch
      %35 = sbr.rel (0) target = $region13
    $region12: #{tpu_custom_call.1} parent=1 // pred_region
      %s37 = ssub.s32 1024, 1024
      %38 = vsyncadd [#allocation7], %s37
      %s39 = sshll.u32 [#allocation8], 4
      %s40 = int_to_ptr.vmem [resolvable:$true] %s39
      %45 = dma.hbm_to_vmem [thread:$0]  %s2, 1024, %s40, [#allocation7], 256, 256, 16
    $region13: #{tpu_custom_call.1} parent=1 // pred_fallthru
      _
    // Predicated region
    $region14: #{tpu_custom_call.1} parent=1 // pred_check
      _
    $region15: #{tpu_custom_call.1} parent=1 // pred_check_branch
      %47 = sbr.rel (0) target = $region17
    $region16: #{tpu_custom_call.1} parent=1 // pred_region
      _
    $region17: #{tpu_custom_call.1} parent=1 // pred_fallthru
      _
    // Predicated region
    $region18: #{tpu_custom_call.1} parent=1 // pred_check
      _
    $region19: #{tpu_custom_call.1} parent=1 // pred_check_branch
      %49 = sbr.rel (0) target = $region21
    $region20: #{tpu_custom_call.1} parent=1 // pred_region
      %50 = dma.done [#allocation4], 128
    $region21: #{tpu_custom_call.1} parent=1 // pred_fallthru
      _
    // Predicated region
    $region22: #{tpu_custom_call.1} parent=1 // pred_check
      _
    $region23: #{tpu_custom_call.1} parent=1 // pred_check_branch
      %52 = sbr.rel (0) target = $region25
    $region24: #{tpu_custom_call.1} parent=1 // pred_region
      %53 = dma.done [#allocation7], 1536
    $region25: #{tpu_custom_call.1} parent=1 // pred_fallthru
      _
    // Predicated region
    $region26: #{tpu_custom_call.1} parent=1 // pred_check
      _
    $region27: #{tpu_custom_call.1} parent=1 // pred_check_branch
      %55 = sbr.rel (0) target = $region29
    $region28: #{tpu_custom_call.1} parent=1 // pred_region
      %56 = dma.done [#allocation7], 1024
    $region29: #{tpu_custom_call.1} parent=1 // pred_fallthru
      _
    %v57 = vld [vmem:[#allocation3] sm:$0xff]
    %v58 = vld [vmem:[#allocation6] sm:$0xff]
    %v59 = vld [vmem:[#allocation6 + $0x8] sm:$0xff]
    %v60 = vld [vmem:[#allocation6 + $0x10] sm:$0xff]
    %v61 = vld [vmem:[#allocation6 + $0x18] sm:$0xff]
    %v62 = vld [vmem:[#allocation6 + $0x20] sm:$0xff]
    %v63 = vld [vmem:[#allocation6 + $0x28] sm:$0xff]
    %v64 = vld [vmem:[#allocation6 + $0x30] sm:$0xff]
    %v65 = vld [vmem:[#allocation6 + $0x38] sm:$0xff]
    %v66 = vld [vmem:[#allocation6 + $0x40] sm:$0xff]
    %v67 = vld [vmem:[#allocation6 + $0x48] sm:$0xff]
    %v68 = vld [vmem:[#allocation6 + $0x50] sm:$0xff]
    %v69 = vld [vmem:[#allocation6 + $0x58] sm:$0xff]
    %v70 = vld [vmem:[%s3] sm:$0x3]
    %v72 = vlaneseq
    %v73 = vshrl.u32 %v72, 7
    %v74 = vsub.s32 0, %v73
    %v75 = vrot.slane %v70, %v74
    %v76 = vlaneseq
    %v77 = vshrl.u32 %v76, 7
    %v78 = vsub.s32 1, %v77
    %v79 = vrot.slane %v70, %v78
    %vm82 = vcmask 392192
    %v84 = vsel %vm82, %v57, 0
    %86 = vmatprep.subr.mxu0 %v59
    %87 = vmatpush1.msra.mxu0 %v58
    %88 = vmatprep.subr.mxu0 %v61
    %89 = vmatpush1.msra.mxu0 %v60
    %90 = vmatprep.subr.mxu0 %v63
    %91 = vmatpush1.msra.mxu0 %v62
    %92 = vmatprep.subr.mxu0 %v65
    %93 = vmatpush1.msra.mxu0 %v64
    %94 = vmatprep.subr.mxu0 %v67
    %95 = vmatpush1.msra.mxu0 %v66
    %96 = vmatprep.subr.mxu0 %v69
    %97 = vmatpush1.msra.mxu0 %v68
    %98 = vmatprep.subr.mxu0 0.0
    %99 = vmatpush1.msra.mxu0 0.0
    %100 = vmatprep.subr.mxu0 0.0
    %101 = vmatpush1.msra.mxu0 0.0
    %102 = vmatprep.subr.mxu0 0.0
    %103 = vmatpush1.msra.mxu0 0.0
    %104 = vmatprep.subr.mxu0 0.0
    %105 = vmatpush1.msra.mxu0 0.0
    %106 = vmatprep.subr.mxu0 0.0
    %107 = vmatpush1.msra.mxu0 0.0
    %108 = vmatprep.subr.mxu0 0.0
    %109 = vmatpush1.msra.mxu0 0.0
    %110 = vmatprep.subr.mxu0 0.0
    %111 = vmatpush1.msra.mxu0 0.0
    %112 = vmatprep.subr.mxu0 0.0
    %113 = vmatpush1.msra.mxu0 0.0
    %114 = vmatprep.subr.mxu0 0.0
    %115 = vmatpush1.msra.mxu0 0.0
    %116 = vmatprep.subr.mxu0 0.0
    %117 = vmatpush1.msra.mxu0 0.0
    %118 = vmatprep.subr.mxu0 0.0
    %119 = vmatpush1.msra.mxu0 0.0
    %120 = vmatprep.subr.mxu0 0.0
    %121 = vmatpush1.msra.mxu0 0.0
    %122 = vmatprep.subr.mxu0 0.0
    %123 = vmatpush1.msra.mxu0 0.0
    %124 = vmatprep.subr.mxu0 0.0
    %125 = vmatpush1.msra.mxu0 0.0
    %126 = vmatprep.subr.mxu0 0.0
    %127 = vmatpush1.msra.mxu0 0.0
    %128 = vmatprep.subr.mxu0 0.0
    %129 = vmatpush1.msra.mxu0 0.0
    %130 = vmatprep.subr.mxu0 0.0
    %131 = vmatpush1.msra.mxu0 0.0
    %132 = vmatprep.subr.mxu0 0.0
    %133 = vmatpush1.msra.mxu0 0.0
    %134 = vmatprep.subr.mxu0 0.0
    %135 = vmatpush1.msra.mxu0 0.0
    %136 = vmatprep.subr.mxu0 0.0
    %137 = vmatpush1.msra.mxu0 0.0
    %138 = vmatprep.subr.mxu0 0.0
    %139 = vmatpush1.msra.mxu0 0.0
    %140 = vmatprep.subr.mxu0 0.0
    %141 = vmatpush1.msra.mxu0 0.0
    %142 = vmatprep.subr.mxu0 0.0
    %143 = vmatpush1.msra.mxu0 0.0
    %144 = vmatprep.subr.mxu0 0.0
    %145 = vmatpush1.msra.mxu0 0.0
    %146 = vmatprep.subr.mxu0 0.0
    %147 = vmatpush1.msra.mxu0 0.0
    %148 = vmatprep.subr.mxu0 0.0
    %149 = vmatpush1.msra.mxu0 0.0
    %150 = vmatprep.mubr.f32.mxu0 0.0
    %151 = vmatmul.mubr.f32.gmra.mrb[0].mxu0 %v84
    %v152 = vpop.f32.mrb[0].mxu0
    %v153 = vadd.f32 %v75, %v152
    %v154 = vpop.f32.mrb[0].mxu0
    %v155 = vadd.f32 %v79, %v154
    %156 = vdwg.mxu0
    %157 = vst [vmem:[#allocation2] sm:$0xff] %v153
    %158 = vst [vmem:[#allocation2 + $0x8] sm:$0xff] %v155
    %v159 = vld [vmem:[#allocation8] sm:$0xff]
    %v160 = vld [vmem:[#allocation8 + $0x8] sm:$0xff]
    %v161 = vld [vmem:[#allocation8 + $0x10] sm:$0xff]
    %v162 = vld [vmem:[#allocation8 + $0x18] sm:$0xff]
    %v163 = vld [vmem:[#allocation8 + $0x20] sm:$0xff]
    %v164 = vld [vmem:[#allocation8 + $0x28] sm:$0xff]
    %v165 = vld [vmem:[#allocation8 + $0x30] sm:$0xff]
    %v166 = vld [vmem:[#allocation8 + $0x38] sm:$0xff]
    %vm167 = vcmask 261120
    %v169 = vsel %vm167, 0.0, 0
    %171 = vmatprep.subr.mxu0 %v160
    %172 = vmatpush1.msra.mxu0 %v159
    %173 = vmatprep.subr.mxu0 %v162
    %174 = vmatpush1.msra.mxu0 %v161
    %175 = vmatprep.subr.mxu0 %v164
    %176 = vmatpush1.msra.mxu0 %v163
    %177 = vmatprep.subr.mxu0 %v166
    %178 = vmatpush1.msra.mxu0 %v165
    %179 = vmatprep.subr.mxu0 0.0
    %180 = vmatpush1.msra.mxu0 0.0
    %181 = vmatprep.subr.mxu0 0.0
    %182 = vmatpush1.msra.mxu0 0.0
    %183 = vmatprep.subr.mxu0 0.0
    %184 = vmatpush1.msra.mxu0 0.0
    %185 = vmatprep.subr.mxu0 0.0
    %186 = vmatpush1.msra.mxu0 0.0
    %187 = vmatprep.subr.mxu0 0.0
    %188 = vmatpush1.msra.mxu0 0.0
    %189 = vmatprep.subr.mxu0 0.0
    %190 = vmatpush1.msra.mxu0 0.0
    %191 = vmatprep.subr.mxu0 0.0
    %192 = vmatpush1.msra.mxu0 0.0
    %193 = vmatprep.subr.mxu0 0.0
    %194 = vmatpush1.msra.mxu0 0.0
    %195 = vmatprep.subr.mxu0 0.0
    %196 = vmatpush1.msra.mxu0 0.0
    %197 = vmatprep.subr.mxu0 0.0
    %198 = vmatpush1.msra.mxu0 0.0
    %199 = vmatprep.subr.mxu0 0.0
    %200 = vmatpush1.msra.mxu0 0.0
    %201 = vmatprep.subr.mxu0 0.0
    %202 = vmatpush1.msra.mxu0 0.0
    %203 = vmatprep.subr.mxu0 0.0
    %204 = vmatpush1.msra.mxu0 0.0
    %205 = vmatprep.subr.mxu0 0.0
    %206 = vmatpush1.msra.mxu0 0.0
    %207 = vmatprep.subr.mxu0 0.0
    %208 = vmatpush1.msra.mxu0 0.0
    %209 = vmatprep.subr.mxu0 0.0
    %210 = vmatpush1.msra.mxu0 0.0
    %211 = vmatprep.subr.mxu0 0.0
    %212 = vmatpush1.msra.mxu0 0.0
    %213 = vmatprep.subr.mxu0 0.0
    %214 = vmatpush1.msra.mxu0 0.0
    %215 = vmatprep.subr.mxu0 0.0
    %216 = vmatpush1.msra.mxu0 0.0
    %217 = vmatprep.subr.mxu0 0.0
    %218 = vmatpush1.msra.mxu0 0.0
    %219 = vmatprep.subr.mxu0 0.0
    %220 = vmatpush1.msra.mxu0 0.0
    %221 = vmatprep.subr.mxu0 0.0
    %222 = vmatpush1.msra.mxu0 0.0
    %223 = vmatprep.subr.mxu0 0.0
    %224 = vmatpush1.msra.mxu0 0.0
    %225 = vmatprep.subr.mxu0 0.0
    %226 = vmatpush1.msra.mxu0 0.0
    %227 = vmatprep.subr.mxu0 0.0
    %228 = vmatpush1.msra.mxu0 0.0
    %229 = vmatprep.subr.mxu0 0.0
    %230 = vmatpush1.msra.mxu0 0.0
    %231 = vmatprep.subr.mxu0 0.0
    %232 = vmatpush1.msra.mxu0 0.0
    %233 = vmatprep.subr.mxu0 0.0
    %234 = vmatpush1.msra.mxu0 0.0
    %235 = vmatprep.mubr.f32.mxu0 0.0
    %236 = vmatmul.mubr.f32.gmra.mrb[0].mxu0 %v169
    %v237 = vpop.f32.mrb[0].mxu0
    %v238 = vadd.f32 0.0, %v237
    %v239 = vpop.f32.mrb[0].mxu0
    %v240 = vadd.f32 0.0, %v239
    %241 = vdwg.mxu0
    %v242 = vld [vmem:[#allocation2] ss:$0 sm:$0xff]
    %v243 = vadd.f32 %v242, %v238
    %v244 = vld [vmem:[#allocation2 + $0xf] ss:$0 sm:$0xff]
    %v245 = vadd.f32 %v244, %v240
    %vm246 = vcmask 1040384
    %v247 = vsel %vm246, %v243, %v245
    %v248 = vxor.u32 %v247, 2147483648
    %v249 = vmul.f32 %v248, 1.442695
    %v250 = vpow.pop %v249
    %v251 = vadd.f32 %v250, 1.0
    %v252 = vrcp.pop %v251
    %v253 = vmul.f32 1.0, %v252
    %v254 = vtanh.pop %v247
    %v255 = vmul.f32 %v253, 0.0
    %257 = vrot.lane.b32.xlu0 %v254, 64
    %v258 = vpop.permute.xlu0 %257
    %v260 = vmul.f32 %v253, %v258
    %262 = vrot.lane.b32.xlu0 %v260, 32
    %v263 = vpop.permute.xlu0 %262
    %v265 = vadd.f32 %v255, %v263
    %v266 = vtanh.pop %v265
    %268 = vrot.lane.b32.xlu0 %v266, 64
    %v269 = vpop.permute.xlu0 %268
    %v271 = vmul.f32 %v253, %v269
    %273 = vrot.lane.b32.xlu0 %v271, 32
    %v274 = vpop.permute.xlu0 %273
    %v275 = vsel %vm167, %v274, 0
    %277 = vmatprep.subr.mxu0 %v160
    %278 = vmatpush1.msra.mxu0 %v159
    %279 = vmatprep.subr.mxu0 %v162
    %280 = vmatpush1.msra.mxu0 %v161
    %281 = vmatprep.subr.mxu0 %v164
    %282 = vmatpush1.msra.mxu0 %v163
    %283 = vmatprep.subr.mxu0 %v166
    %284 = vmatpush1.msra.mxu0 %v165
    %285 = vmatprep.subr.mxu0 0.0
    %286 = vmatpush1.msra.mxu0 0.0
    %287 = vmatprep.subr.mxu0 0.0
    %288 = vmatpush1.msra.mxu0 0.0
    %289 = vmatprep.subr.mxu0 0.0
    %290 = vmatpush1.msra.mxu0 0.0
    %291 = vmatprep.subr.mxu0 0.0
    %292 = vmatpush1.msra.mxu0 0.0
    %293 = vmatprep.subr.mxu0 0.0
    %294 = vmatpush1.msra.mxu0 0.0
    %295 = vmatprep.subr.mxu0 0.0
    %296 = vmatpush1.msra.mxu0 0.0
    %297 = vmatprep.subr.mxu0 0.0
    %298 = vmatpush1.msra.mxu0 0.0
    %299 = vmatprep.subr.mxu0 0.0
    %300 = vmatpush1.msra.mxu0 0.0
    %301 = vmatprep.subr.mxu0 0.0
    %302 = vmatpush1.msra.mxu0 0.0
    %303 = vmatprep.subr.mxu0 0.0
    %304 = vmatpush1.msra.mxu0 0.0
    %305 = vmatprep.subr.mxu0 0.0
    %306 = vmatpush1.msra.mxu0 0.0
    %307 = vmatprep.subr.mxu0 0.0
    %308 = vmatpush1.msra.mxu0 0.0
    %309 = vmatprep.subr.mxu0 0.0
    %310 = vmatpush1.msra.mxu0 0.0
    %311 = vmatprep.subr.mxu0 0.0
    %312 = vmatpush1.msra.mxu0 0.0
    %313 = vmatprep.subr.mxu0 0.0
    %314 = vmatpush1.msra.mxu0 0.0
    %315 = vmatprep.subr.mxu0 0.0
    %316 = vmatpush1.msra.mxu0 0.0
    %317 = vmatprep.subr.mxu0 0.0
    %318 = vmatpush1.msra.mxu0 0.0
    %319 = vmatprep.subr.mxu0 0.0
    %320 = vmatpush1.msra.mxu0 0.0
    %321 = vmatprep.subr.mxu0 0.0
    %322 = vmatpush1.msra.mxu0 0.0
    %323 = vmatprep.subr.mxu0 0.0
    %324 = vmatpush1.msra.mxu0 0.0
    %325 = vmatprep.subr.mxu0 0.0
    %326 = vmatpush1.msra.mxu0 0.0
    %327 = vmatprep.subr.mxu0 0.0
    %328 = vmatpush1.msra.mxu0 0.0
    %329 = vmatprep.subr.mxu0 0.0
    %330 = vmatpush1.msra.mxu0 0.0
    %331 = vmatprep.subr.mxu0 0.0
    %332 = vmatpush1.msra.mxu0 0.0
    %333 = vmatprep.subr.mxu0 0.0
    %334 = vmatpush1.msra.mxu0 0.0
    %335 = vmatprep.subr.mxu0 0.0
    %336 = vmatpush1.msra.mxu0 0.0
    %337 = vmatprep.subr.mxu0 0.0
    %338 = vmatpush1.msra.mxu0 0.0
    %339 = vmatprep.subr.mxu0 0.0
    %340 = vmatpush1.msra.mxu0 0.0
    %341 = vmatprep.mubr.f32.mxu0 0.0
    %342 = vmatmul.mubr.f32.gmra.mrb[0].mxu0 %v275
    %v343 = vpop.f32.mrb[0].mxu0
    %v344 = vadd.f32 0.0, %v343
    %v345 = vpop.f32.mrb[0].mxu0
    %v346 = vadd.f32 0.0, %v345
    %347 = vdwg.mxu0
    %v348 = vld [vmem:[#allocation2 + $0x1] ss:$0 sm:$0xff]
    %v349 = vadd.f32 %v348, %v344
    %v350 = vld [vmem:[#allocation2 + $0xe] ss:$0 sm:$0xff]
    %v351 = vadd.f32 %v350, %v346
    %v352 = vsel %vm246, %v349, %v351
    %v353 = vxor.u32 %v352, 2147483648
    %v354 = vmul.f32 %v353, 1.442695
    %v355 = vpow.pop %v354
    %v356 = vadd.f32 %v355, 1.0
    %v357 = vrcp.pop %v356
    %v358 = vmul.f32 1.0, %v357
    %v359 = vtanh.pop %v352
    %v360 = vmul.f32 %v358, %v265
    %362 = vrot.lane.b32.xlu0 %v359, 64
    %v363 = vpop.permute.xlu0 %362
    %v365 = vmul.f32 %v358, %v363
    %367 = vrot.lane.b32.xlu0 %v365, 32
    %v368 = vpop.permute.xlu0 %367
    %v370 = vadd.f32 %v360, %v368
    %v371 = vtanh.pop %v370
    %373 = vrot.lane.b32.xlu0 %v371, 64
    %v374 = vpop.permute.xlu0 %373
    %v376 = vmul.f32 %v358, %v374
    %378 = vrot.lane.b32.xlu0 %v376, 32
    %v379 = vpop.permute.xlu0 %378
    %v380 = vsel %vm167, %v379, 0
    %382 = vmatprep.subr.mxu0 %v160
    %383 = vmatpush1.msra.mxu0 %v159
    %384 = vmatprep.subr.mxu0 %v162
    %385 = vmatpush1.msra.mxu0 %v161
    %386 = vmatprep.subr.mxu0 %v164
    %387 = vmatpush1.msra.mxu0 %v163
    %388 = vmatprep.subr.mxu0 %v166
    %389 = vmatpush1.msra.mxu0 %v165
    %390 = vmatprep.subr.mxu0 0.0
    %391 = vmatpush1.msra.mxu0 0.0
    %392 = vmatprep.subr.mxu0 0.0
    %393 = vmatpush1.msra.mxu0 0.0
    %394 = vmatprep.subr.mxu0 0.0
    %395 = vmatpush1.msra.mxu0 0.0
    %396 = vmatprep.subr.mxu0 0.0
    %397 = vmatpush1.msra.mxu0 0.0
    %398 = vmatprep.subr.mxu0 0.0
    %399 = vmatpush1.msra.mxu0 0.0
    %400 = vmatprep.subr.mxu0 0.0
    %401 = vmatpush1.msra.mxu0 0.0
    %402 = vmatprep.subr.mxu0 0.0
    %403 = vmatpush1.msra.mxu0 0.0
    %404 = vmatprep.subr.mxu0 0.0
    %405 = vmatpush1.msra.mxu0 0.0
    %406 = vmatprep.subr.mxu0 0.0
    %407 = vmatpush1.msra.mxu0 0.0
    %408 = vmatprep.subr.mxu0 0.0
    %409 = vmatpush1.msra.mxu0 0.0
    %410 = vmatprep.subr.mxu0 0.0
    %411 = vmatpush1.msra.mxu0 0.0
    %412 = vmatprep.subr.mxu0 0.0
    %413 = vmatpush1.msra.mxu0 0.0
    %414 = vmatprep.subr.mxu0 0.0
    %415 = vmatpush1.msra.mxu0 0.0
    %416 = vmatprep.subr.mxu0 0.0
    %417 = vmatpush1.msra.mxu0 0.0
    %418 = vmatprep.subr.mxu0 0.0
    %419 = vmatpush1.msra.mxu0 0.0
    %420 = vmatprep.subr.mxu0 0.0
    %421 = vmatpush1.msra.mxu0 0.0
    %422 = vmatprep.subr.mxu0 0.0
    %423 = vmatpush1.msra.mxu0 0.0
    %424 = vmatprep.subr.mxu0 0.0
    %425 = vmatpush1.msra.mxu0 0.0
    %426 = vmatprep.subr.mxu0 0.0
    %427 = vmatpush1.msra.mxu0 0.0
    %428 = vmatprep.subr.mxu0 0.0
    %429 = vmatpush1.msra.mxu0 0.0
    %430 = vmatprep.subr.mxu0 0.0
    %431 = vmatpush1.msra.mxu0 0.0
    %432 = vmatprep.subr.mxu0 0.0
    %433 = vmatpush1.msra.mxu0 0.0
    %434 = vmatprep.subr.mxu0 0.0
    %435 = vmatpush1.msra.mxu0 0.0
    %436 = vmatprep.subr.mxu0 0.0
    %437 = vmatpush1.msra.mxu0 0.0
    %438 = vmatprep.subr.mxu0 0.0
    %439 = vmatpush1.msra.mxu0 0.0
    %440 = vmatprep.subr.mxu0 0.0
    %441 = vmatpush1.msra.mxu0 0.0
    %442 = vmatprep.subr.mxu0 0.0
    %443 = vmatpush1.msra.mxu0 0.0
    %444 = vmatprep.subr.mxu0 0.0
    %445 = vmatpush1.msra.mxu0 0.0
    %446 = vmatprep.mubr.f32.mxu0 0.0
    %447 = vmatmul.mubr.f32.gmra.mrb[0].mxu0 %v380
    %v448 = vpop.f32.mrb[0].mxu0
    %v449 = vadd.f32 0.0, %v448
    %v450 = vpop.f32.mrb[0].mxu0
    %v451 = vadd.f32 0.0, %v450
    %452 = vdwg.mxu0
    %v453 = vld [vmem:[#allocation2 + $0x2] ss:$0 sm:$0xff]
    %v454 = vadd.f32 %v453, %v449
    %v455 = vld [vmem:[#allocation2 + $0xd] ss:$0 sm:$0xff]
    %v456 = vadd.f32 %v455, %v451
    %v457 = vsel %vm246, %v454, %v456
    %v458 = vxor.u32 %v457, 2147483648
    %v459 = vmul.f32 %v458, 1.442695
    %v460 = vpow.pop %v459
    %v461 = vadd.f32 %v460, 1.0
    %v462 = vrcp.pop %v461
    %v463 = vmul.f32 1.0, %v462
    %v464 = vtanh.pop %v457
    %v465 = vmul.f32 %v463, %v370
    %467 = vrot.lane.b32.xlu0 %v464, 64
    %v468 = vpop.permute.xlu0 %467
    %v470 = vmul.f32 %v463, %v468
    %472 = vrot.lane.b32.xlu0 %v470, 32
    %v473 = vpop.permute.xlu0 %472
    %v475 = vadd.f32 %v465, %v473
    %v476 = vtanh.pop %v475
    %478 = vrot.lane.b32.xlu0 %v476, 64
    %v479 = vpop.permute.xlu0 %478
    %v481 = vmul.f32 %v463, %v479
    %483 = vrot.lane.b32.xlu0 %v481, 32
    %v484 = vpop.permute.xlu0 %483
    %v485 = vsel %vm167, %v484, 0
    %487 = vmatprep.subr.mxu0 %v160
    %488 = vmatpush1.msra.mxu0 %v159
    %489 = vmatprep.subr.mxu0 %v162
    %490 = vmatpush1.msra.mxu0 %v161
    %491 = vmatprep.subr.mxu0 %v164
    %492 = vmatpush1.msra.mxu0 %v163
    %493 = vmatprep.subr.mxu0 %v166
    %494 = vmatpush1.msra.mxu0 %v165
    %495 = vmatprep.subr.mxu0 0.0
    %496 = vmatpush1.msra.mxu0 0.0
    %497 = vmatprep.subr.mxu0 0.0
    %498 = vmatpush1.msra.mxu0 0.0
    %499 = vmatprep.subr.mxu0 0.0
    %500 = vmatpush1.msra.mxu0 0.0
    %501 = vmatprep.subr.mxu0 0.0
    %502 = vmatpush1.msra.mxu0 0.0
    %503 = vmatprep.subr.mxu0 0.0
    %504 = vmatpush1.msra.mxu0 0.0
    %505 = vmatprep.subr.mxu0 0.0
    %506 = vmatpush1.msra.mxu0 0.0
    %507 = vmatprep.subr.mxu0 0.0
    %508 = vmatpush1.msra.mxu0 0.0
    %509 = vmatprep.subr.mxu0 0.0
    %510 = vmatpush1.msra.mxu0 0.0
    %511 = vmatprep.subr.mxu0 0.0
    %512 = vmatpush1.msra.mxu0 0.0
    %513 = vmatprep.subr.mxu0 0.0
    %514 = vmatpush1.msra.mxu0 0.0
    %515 = vmatprep.subr.mxu0 0.0
    %516 = vmatpush1.msra.mxu0 0.0
    %517 = vmatprep.subr.mxu0 0.0
    %518 = vmatpush1.msra.mxu0 0.0
    %519 = vmatprep.subr.mxu0 0.0
    %520 = vmatpush1.msra.mxu0 0.0
    %521 = vmatprep.subr.mxu0 0.0
    %522 = vmatpush1.msra.mxu0 0.0
    %523 = vmatprep.subr.mxu0 0.0
    %524 = vmatpush1.msra.mxu0 0.0
    %525 = vmatprep.subr.mxu0 0.0
    %526 = vmatpush1.msra.mxu0 0.0
    %527 = vmatprep.subr.mxu0 0.0
    %528 = vmatpush1.msra.mxu0 0.0
    %529 = vmatprep.subr.mxu0 0.0
    %530 = vmatpush1.msra.mxu0 0.0
    %531 = vmatprep.subr.mxu0 0.0
    %532 = vmatpush1.msra.mxu0 0.0
    %533 = vmatprep.subr.mxu0 0.0
    %534 = vmatpush1.msra.mxu0 0.0
    %535 = vmatprep.subr.mxu0 0.0
    %536 = vmatpush1.msra.mxu0 0.0
    %537 = vmatprep.subr.mxu0 0.0
    %538 = vmatpush1.msra.mxu0 0.0
    %539 = vmatprep.subr.mxu0 0.0
    %540 = vmatpush1.msra.mxu0 0.0
    %541 = vmatprep.subr.mxu0 0.0
    %542 = vmatpush1.msra.mxu0 0.0
    %543 = vmatprep.subr.mxu0 0.0
    %544 = vmatpush1.msra.mxu0 0.0
    %545 = vmatprep.subr.mxu0 0.0
    %546 = vmatpush1.msra.mxu0 0.0
    %547 = vmatprep.subr.mxu0 0.0
    %548 = vmatpush1.msra.mxu0 0.0
    %549 = vmatprep.subr.mxu0 0.0
    %550 = vmatpush1.msra.mxu0 0.0
    %551 = vmatprep.mubr.f32.mxu0 0.0
    %552 = vmatmul.mubr.f32.gmra.mrb[0].mxu0 %v485
    %v553 = vpop.f32.mrb[0].mxu0
    %v554 = vadd.f32 0.0, %v553
    %v555 = vpop.f32.mrb[0].mxu0
    %v556 = vadd.f32 0.0, %v555
    %557 = vdwg.mxu0
    %v558 = vld [vmem:[#allocation2 + $0x3] ss:$0 sm:$0xff]
    %v559 = vadd.f32 %v558, %v554
    %v560 = vld [vmem:[#allocation2 + $0xc] ss:$0 sm:$0xff]
    %v561 = vadd.f32 %v560, %v556
    %v562 = vsel %vm246, %v559, %v561
    %v563 = vxor.u32 %v562, 2147483648
    %v564 = vmul.f32 %v563, 1.442695
    %v565 = vpow.pop %v564
    %v566 = vadd.f32 %v565, 1.0
    %v567 = vrcp.pop %v566
    %v568 = vmul.f32 1.0, %v567
    %v569 = vtanh.pop %v562
    %v570 = vmul.f32 %v568, %v475
    %572 = vrot.lane.b32.xlu0 %v569, 64
    %v573 = vpop.permute.xlu0 %572
    %v575 = vmul.f32 %v568, %v573
    %577 = vrot.lane.b32.xlu0 %v575, 32
    %v578 = vpop.permute.xlu0 %577
    %v580 = vadd.f32 %v570, %v578
    %v581 = vtanh.pop %v580
    %583 = vrot.lane.b32.xlu0 %v581, 64
    %v584 = vpop.permute.xlu0 %583
    %v586 = vmul.f32 %v568, %v584
    %588 = vrot.lane.b32.xlu0 %v586, 32
    %v589 = vpop.permute.xlu0 %588
    %v590 = vsel %vm167, %v589, 0
    %592 = vmatprep.subr.mxu0 %v160
    %593 = vmatpush1.msra.mxu0 %v159
    %594 = vmatprep.subr.mxu0 %v162
    %595 = vmatpush1.msra.mxu0 %v161
    %596 = vmatprep.subr.mxu0 %v164
    %597 = vmatpush1.msra.mxu0 %v163
    %598 = vmatprep.subr.mxu0 %v166
    %599 = vmatpush1.msra.mxu0 %v165
    %600 = vmatprep.subr.mxu0 0.0
    %601 = vmatpush1.msra.mxu0 0.0
    %602 = vmatprep.subr.mxu0 0.0
    %603 = vmatpush1.msra.mxu0 0.0
    %604 = vmatprep.subr.mxu0 0.0
    %605 = vmatpush1.msra.mxu0 0.0
    %606 = vmatprep.subr.mxu0 0.0
    %607 = vmatpush1.msra.mxu0 0.0
    %608 = vmatprep.subr.mxu0 0.0
    %609 = vmatpush1.msra.mxu0 0.0
    %610 = vmatprep.subr.mxu0 0.0
    %611 = vmatpush1.msra.mxu0 0.0
    %612 = vmatprep.subr.mxu0 0.0
    %613 = vmatpush1.msra.mxu0 0.0
    %614 = vmatprep.subr.mxu0 0.0
    %615 = vmatpush1.msra.mxu0 0.0
    %616 = vmatprep.subr.mxu0 0.0
    %617 = vmatpush1.msra.mxu0 0.0
    %618 = vmatprep.subr.mxu0 0.0
    %619 = vmatpush1.msra.mxu0 0.0
    %620 = vmatprep.subr.mxu0 0.0
    %621 = vmatpush1.msra.mxu0 0.0
    %622 = vmatprep.subr.mxu0 0.0
    %623 = vmatpush1.msra.mxu0 0.0
    %624 = vmatprep.subr.mxu0 0.0
    %625 = vmatpush1.msra.mxu0 0.0
    %626 = vmatprep.subr.mxu0 0.0
    %627 = vmatpush1.msra.mxu0 0.0
    %628 = vmatprep.subr.mxu0 0.0
    %629 = vmatpush1.msra.mxu0 0.0
    %630 = vmatprep.subr.mxu0 0.0
    %631 = vmatpush1.msra.mxu0 0.0
    %632 = vmatprep.subr.mxu0 0.0
    %633 = vmatpush1.msra.mxu0 0.0
    %634 = vmatprep.subr.mxu0 0.0
    %635 = vmatpush1.msra.mxu0 0.0
    %636 = vmatprep.subr.mxu0 0.0
    %637 = vmatpush1.msra.mxu0 0.0
    %638 = vmatprep.subr.mxu0 0.0
    %639 = vmatpush1.msra.mxu0 0.0
    %640 = vmatprep.subr.mxu0 0.0
    %641 = vmatpush1.msra.mxu0 0.0
    %642 = vmatprep.subr.mxu0 0.0
    %643 = vmatpush1.msra.mxu0 0.0
    %644 = vmatprep.subr.mxu0 0.0
    %645 = vmatpush1.msra.mxu0 0.0
    %646 = vmatprep.subr.mxu0 0.0
    %647 = vmatpush1.msra.mxu0 0.0
    %648 = vmatprep.subr.mxu0 0.0
    %649 = vmatpush1.msra.mxu0 0.0
    %650 = vmatprep.subr.mxu0 0.0
    %651 = vmatpush1.msra.mxu0 0.0
    %652 = vmatprep.subr.mxu0 0.0
    %653 = vmatpush1.msra.mxu0 0.0
    %654 = vmatprep.subr.mxu0 0.0
    %655 = vmatpush1.msra.mxu0 0.0
    %656 = vmatprep.mubr.f32.mxu0 0.0
    %657 = vmatmul.mubr.f32.gmra.mrb[0].mxu0 %v590
    %v658 = vpop.f32.mrb[0].mxu0
    %v659 = vadd.f32 0.0, %v658
    %v660 = vpop.f32.mrb[0].mxu0
    %v661 = vadd.f32 0.0, %v660
    %662 = vdwg.mxu0
    %v663 = vld [vmem:[#allocation2 + $0x4] ss:$0 sm:$0xff]
    %v664 = vadd.f32 %v663, %v659
    %v665 = vld [vmem:[#allocation2 + $0xb] ss:$0 sm:$0xff]
    %v666 = vadd.f32 %v665, %v661
    %v667 = vsel %vm246, %v664, %v666
    %v668 = vxor.u32 %v667, 2147483648
    %v669 = vmul.f32 %v668, 1.442695
    %v670 = vpow.pop %v669
    %v671 = vadd.f32 %v670, 1.0
    %v672 = vrcp.pop %v671
    %v673 = vmul.f32 1.0, %v672
    %v674 = vtanh.pop %v667
    %v675 = vmul.f32 %v673, %v580
    %677 = vrot.lane.b32.xlu0 %v674, 64
    %v678 = vpop.permute.xlu0 %677
    %v680 = vmul.f32 %v673, %v678
    %682 = vrot.lane.b32.xlu0 %v680, 32
    %v683 = vpop.permute.xlu0 %682
    %v685 = vadd.f32 %v675, %v683
    %v686 = vtanh.pop %v685
    %688 = vrot.lane.b32.xlu0 %v686, 64
    %v689 = vpop.permute.xlu0 %688
    %v691 = vmul.f32 %v673, %v689
    %693 = vrot.lane.b32.xlu0 %v691, 32
    %v694 = vpop.permute.xlu0 %693
    %v695 = vsel %vm167, %v694, 0
    %697 = vmatprep.subr.mxu0 %v160
    %698 = vmatpush1.msra.mxu0 %v159
    %699 = vmatprep.subr.mxu0 %v162
    %700 = vmatpush1.msra.mxu0 %v161
    %701 = vmatprep.subr.mxu0 %v164
    %702 = vmatpush1.msra.mxu0 %v163
    %703 = vmatprep.subr.mxu0 %v166
    %704 = vmatpush1.msra.mxu0 %v165
    %705 = vmatprep.subr.mxu0 0.0
    %706 = vmatpush1.msra.mxu0 0.0
    %707 = vmatprep.subr.mxu0 0.0
    %708 = vmatpush1.msra.mxu0 0.0
    %709 = vmatprep.subr.mxu0 0.0
    %710 = vmatpush1.msra.mxu0 0.0
    %711 = vmatprep.subr.mxu0 0.0
    %712 = vmatpush1.msra.mxu0 0.0
    %713 = vmatprep.subr.mxu0 0.0
    %714 = vmatpush1.msra.mxu0 0.0
    %715 = vmatprep.subr.mxu0 0.0
    %716 = vmatpush1.msra.mxu0 0.0
    %717 = vmatprep.subr.mxu0 0.0
    %718 = vmatpush1.msra.mxu0 0.0
    %719 = vmatprep.subr.mxu0 0.0
    %720 = vmatpush1.msra.mxu0 0.0
    %721 = vmatprep.subr.mxu0 0.0
    %722 = vmatpush1.msra.mxu0 0.0
    %723 = vmatprep.subr.mxu0 0.0
    %724 = vmatpush1.msra.mxu0 0.0
    %725 = vmatprep.subr.mxu0 0.0
    %726 = vmatpush1.msra.mxu0 0.0
    %727 = vmatprep.subr.mxu0 0.0
    %728 = vmatpush1.msra.mxu0 0.0
    %729 = vmatprep.subr.mxu0 0.0
    %730 = vmatpush1.msra.mxu0 0.0
    %731 = vmatprep.subr.mxu0 0.0
    %732 = vmatpush1.msra.mxu0 0.0
    %733 = vmatprep.subr.mxu0 0.0
    %734 = vmatpush1.msra.mxu0 0.0
    %735 = vmatprep.subr.mxu0 0.0
    %736 = vmatpush1.msra.mxu0 0.0
    %737 = vmatprep.subr.mxu0 0.0
    %738 = vmatpush1.msra.mxu0 0.0
    %739 = vmatprep.subr.mxu0 0.0
    %740 = vmatpush1.msra.mxu0 0.0
    %741 = vmatprep.subr.mxu0 0.0
    %742 = vmatpush1.msra.mxu0 0.0
    %743 = vmatprep.subr.mxu0 0.0
    %744 = vmatpush1.msra.mxu0 0.0
    %745 = vmatprep.subr.mxu0 0.0
    %746 = vmatpush1.msra.mxu0 0.0
    %747 = vmatprep.subr.mxu0 0.0
    %748 = vmatpush1.msra.mxu0 0.0
    %749 = vmatprep.subr.mxu0 0.0
    %750 = vmatpush1.msra.mxu0 0.0
    %751 = vmatprep.subr.mxu0 0.0
    %752 = vmatpush1.msra.mxu0 0.0
    %753 = vmatprep.subr.mxu0 0.0
    %754 = vmatpush1.msra.mxu0 0.0
    %755 = vmatprep.subr.mxu0 0.0
    %756 = vmatpush1.msra.mxu0 0.0
    %757 = vmatprep.subr.mxu0 0.0
    %758 = vmatpush1.msra.mxu0 0.0
    %759 = vmatprep.subr.mxu0 0.0
    %760 = vmatpush1.msra.mxu0 0.0
    %761 = vmatprep.mubr.f32.mxu0 0.0
    %762 = vmatmul.mubr.f32.gmra.mrb[0].mxu0 %v695
    %v763 = vpop.f32.mrb[0].mxu0
    %v764 = vadd.f32 0.0, %v763
    %v765 = vpop.f32.mrb[0].mxu0
    %v766 = vadd.f32 0.0, %v765
    %767 = vdwg.mxu0
    %v768 = vld [vmem:[#allocation2 + $0x5] ss:$0 sm:$0xff]
    %v769 = vadd.f32 %v768, %v764
    %v770 = vld [vmem:[#allocation2 + $0xa] ss:$0 sm:$0xff]
    %v771 = vadd.f32 %v770, %v766
    %v772 = vsel %vm246, %v769, %v771
    %v773 = vxor.u32 %v772, 2147483648
    %v774 = vmul.f32 %v773, 1.442695
    %v775 = vpow.pop %v774
    %v776 = vadd.f32 %v775, 1.0
    %v777 = vrcp.pop %v776
    %v778 = vmul.f32 1.0, %v777
    %v779 = vtanh.pop %v772
    %v780 = vmul.f32 %v778, %v685
    %782 = vrot.lane.b32.xlu0 %v779, 64
    %v783 = vpop.permute.xlu0 %782
    %v785 = vmul.f32 %v778, %v783
    %787 = vrot.lane.b32.xlu0 %v785, 32
    %v788 = vpop.permute.xlu0 %787
    %v790 = vadd.f32 %v780, %v788
    %v791 = vtanh.pop %v790
    %793 = vrot.lane.b32.xlu0 %v791, 64
    %v794 = vpop.permute.xlu0 %793
    %v796 = vmul.f32 %v778, %v794
    %798 = vrot.lane.b32.xlu0 %v796, 32
    %v799 = vpop.permute.xlu0 %798
    %v800 = vsel %vm167, %v799, 0
    %802 = vmatprep.subr.mxu0 %v160
    %803 = vmatpush1.msra.mxu0 %v159
    %804 = vmatprep.subr.mxu0 %v162
    %805 = vmatpush1.msra.mxu0 %v161
    %806 = vmatprep.subr.mxu0 %v164
    %807 = vmatpush1.msra.mxu0 %v163
    %808 = vmatprep.subr.mxu0 %v166
    %809 = vmatpush1.msra.mxu0 %v165
    %810 = vmatprep.subr.mxu0 0.0
    %811 = vmatpush1.msra.mxu0 0.0
    %812 = vmatprep.subr.mxu0 0.0
    %813 = vmatpush1.msra.mxu0 0.0
    %814 = vmatprep.subr.mxu0 0.0
    %815 = vmatpush1.msra.mxu0 0.0
    %816 = vmatprep.subr.mxu0 0.0
    %817 = vmatpush1.msra.mxu0 0.0
    %818 = vmatprep.subr.mxu0 0.0
    %819 = vmatpush1.msra.mxu0 0.0
    %820 = vmatprep.subr.mxu0 0.0
    %821 = vmatpush1.msra.mxu0 0.0
    %822 = vmatprep.subr.mxu0 0.0
    %823 = vmatpush1.msra.mxu0 0.0
    %824 = vmatprep.subr.mxu0 0.0
    %825 = vmatpush1.msra.mxu0 0.0
    %826 = vmatprep.subr.mxu0 0.0
    %827 = vmatpush1.msra.mxu0 0.0
    %828 = vmatprep.subr.mxu0 0.0
    %829 = vmatpush1.msra.mxu0 0.0
    %830 = vmatprep.subr.mxu0 0.0
    %831 = vmatpush1.msra.mxu0 0.0
    %832 = vmatprep.subr.mxu0 0.0
    %833 = vmatpush1.msra.mxu0 0.0
    %834 = vmatprep.subr.mxu0 0.0
    %835 = vmatpush1.msra.mxu0 0.0
    %836 = vmatprep.subr.mxu0 0.0
    %837 = vmatpush1.msra.mxu0 0.0
    %838 = vmatprep.subr.mxu0 0.0
    %839 = vmatpush1.msra.mxu0 0.0
    %840 = vmatprep.subr.mxu0 0.0
    %841 = vmatpush1.msra.mxu0 0.0
    %842 = vmatprep.subr.mxu0 0.0
    %843 = vmatpush1.msra.mxu0 0.0
    %844 = vmatprep.subr.mxu0 0.0
    %845 = vmatpush1.msra.mxu0 0.0
    %846 = vmatprep.subr.mxu0 0.0
    %847 = vmatpush1.msra.mxu0 0.0
    %848 = vmatprep.subr.mxu0 0.0
    %849 = vmatpush1.msra.mxu0 0.0
    %850 = vmatprep.subr.mxu0 0.0
    %851 = vmatpush1.msra.mxu0 0.0
    %852 = vmatprep.subr.mxu0 0.0
    %853 = vmatpush1.msra.mxu0 0.0
    %854 = vmatprep.subr.mxu0 0.0
    %855 = vmatpush1.msra.mxu0 0.0
    %856 = vmatprep.subr.mxu0 0.0
    %857 = vmatpush1.msra.mxu0 0.0
    %858 = vmatprep.subr.mxu0 0.0
    %859 = vmatpush1.msra.mxu0 0.0
    %860 = vmatprep.subr.mxu0 0.0
    %861 = vmatpush1.msra.mxu0 0.0
    %862 = vmatprep.subr.mxu0 0.0
    %863 = vmatpush1.msra.mxu0 0.0
    %864 = vmatprep.subr.mxu0 0.0
    %865 = vmatpush1.msra.mxu0 0.0
    %866 = vmatprep.mubr.f32.mxu0 0.0
    %867 = vmatmul.mubr.f32.gmra.mrb[0].mxu0 %v800
    %v868 = vpop.f32.mrb[0].mxu0
    %v869 = vadd.f32 0.0, %v868
    %v870 = vpop.f32.mrb[0].mxu0
    %v871 = vadd.f32 0.0, %v870
    %872 = vdwg.mxu0
    %v873 = vld [vmem:[#allocation2 + $0x6] ss:$0 sm:$0xff]
    %v874 = vadd.f32 %v873, %v869
    %v875 = vld [vmem:[#allocation2 + $0x9] ss:$0 sm:$0xff]
    %v876 = vadd.f32 %v875, %v871
    %v877 = vsel %vm246, %v874, %v876
    %v878 = vxor.u32 %v877, 2147483648
    %v879 = vmul.f32 %v878, 1.442695
    %v880 = vpow.pop %v879
    %v881 = vadd.f32 %v880, 1.0
    %v882 = vrcp.pop %v881
    %v883 = vmul.f32 1.0, %v882
    %v884 = vtanh.pop %v877
    %v885 = vmul.f32 %v883, %v790
    %887 = vrot.lane.b32.xlu0 %v884, 64
    %v888 = vpop.permute.xlu0 %887
    %v890 = vmul.f32 %v883, %v888
    %892 = vrot.lane.b32.xlu0 %v890, 32
    %v893 = vpop.permute.xlu0 %892
    %v895 = vadd.f32 %v885, %v893
    %v896 = vtanh.pop %v895
    %898 = vrot.lane.b32.xlu0 %v896, 64
    %v899 = vpop.permute.xlu0 %898
    %v901 = vmul.f32 %v883, %v899
    %903 = vrot.lane.b32.xlu0 %v901, 32
    %v904 = vpop.permute.xlu0 %903
    %v905 = vsel %vm167, %v904, 0
    %907 = vmatprep.subr.mxu0 %v160
    %908 = vmatpush1.msra.mxu0 %v159
    %909 = vmatprep.subr.mxu0 %v162
    %910 = vmatpush1.msra.mxu0 %v161
    %911 = vmatprep.subr.mxu0 %v164
    %912 = vmatpush1.msra.mxu0 %v163
    %913 = vmatprep.subr.mxu0 %v166
    %914 = vmatpush1.msra.mxu0 %v165
    %915 = vmatprep.subr.mxu0 0.0
    %916 = vmatpush1.msra.mxu0 0.0
    %917 = vmatprep.subr.mxu0 0.0
    %918 = vmatpush1.msra.mxu0 0.0
    %919 = vmatprep.subr.mxu0 0.0
    %920 = vmatpush1.msra.mxu0 0.0
    %921 = vmatprep.subr.mxu0 0.0
    %922 = vmatpush1.msra.mxu0 0.0
    %923 = vmatprep.subr.mxu0 0.0
    %924 = vmatpush1.msra.mxu0 0.0
    %925 = vmatprep.subr.mxu0 0.0
    %926 = vmatpush1.msra.mxu0 0.0
    %927 = vmatprep.subr.mxu0 0.0
    %928 = vmatpush1.msra.mxu0 0.0
    %929 = vmatprep.subr.mxu0 0.0
    %930 = vmatpush1.msra.mxu0 0.0
    %931 = vmatprep.subr.mxu0 0.0
    %932 = vmatpush1.msra.mxu0 0.0
    %933 = vmatprep.subr.mxu0 0.0
    %934 = vmatpush1.msra.mxu0 0.0
    %935 = vmatprep.subr.mxu0 0.0
    %936 = vmatpush1.msra.mxu0 0.0
    %937 = vmatprep.subr.mxu0 0.0
    %938 = vmatpush1.msra.mxu0 0.0
    %939 = vmatprep.subr.mxu0 0.0
    %940 = vmatpush1.msra.mxu0 0.0
    %941 = vmatprep.subr.mxu0 0.0
    %942 = vmatpush1.msra.mxu0 0.0
    %943 = vmatprep.subr.mxu0 0.0
    %944 = vmatpush1.msra.mxu0 0.0
    %945 = vmatprep.subr.mxu0 0.0
    %946 = vmatpush1.msra.mxu0 0.0
    %947 = vmatprep.subr.mxu0 0.0
    %948 = vmatpush1.msra.mxu0 0.0
    %949 = vmatprep.subr.mxu0 0.0
    %950 = vmatpush1.msra.mxu0 0.0
    %951 = vmatprep.subr.mxu0 0.0
    %952 = vmatpush1.msra.mxu0 0.0
    %953 = vmatprep.subr.mxu0 0.0
    %954 = vmatpush1.msra.mxu0 0.0
    %955 = vmatprep.subr.mxu0 0.0
    %956 = vmatpush1.msra.mxu0 0.0
    %957 = vmatprep.subr.mxu0 0.0
    %958 = vmatpush1.msra.mxu0 0.0
    %959 = vmatprep.subr.mxu0 0.0
    %960 = vmatpush1.msra.mxu0 0.0
    %961 = vmatprep.subr.mxu0 0.0
    %962 = vmatpush1.msra.mxu0 0.0
    %963 = vmatprep.subr.mxu0 0.0
    %964 = vmatpush1.msra.mxu0 0.0
    %965 = vmatprep.subr.mxu0 0.0
    %966 = vmatpush1.msra.mxu0 0.0
    %967 = vmatprep.subr.mxu0 0.0
    %968 = vmatpush1.msra.mxu0 0.0
    %969 = vmatprep.subr.mxu0 0.0
    %970 = vmatpush1.msra.mxu0 0.0
    %971 = vmatprep.mubr.f32.mxu0 0.0
    %972 = vmatmul.mubr.f32.gmra.mrb[0].mxu0 %v905
    %v973 = vpop.f32.mrb[0].mxu0
    %v974 = vadd.f32 0.0, %v973
    %v975 = vpop.f32.mrb[0].mxu0
    %v976 = vadd.f32 0.0, %v975
    %977 = vdwg.mxu0
    %v978 = vld [vmem:[#allocation2 + $0x7] ss:$0 sm:$0xff]
    %v979 = vadd.f32 %v978, %v974
    %v980 = vld [vmem:[#allocation2 + $0x8] ss:$0 sm:$0xff]
    %v981 = vadd.f32 %v980, %v976
    %v982 = vsel %vm246, %v979, %v981
    %v983 = vxor.u32 %v982, 2147483648
    %v984 = vmul.f32 %v983, 1.442695
    %v985 = vpow.pop %v984
    %v986 = vadd.f32 %v985, 1.0
    %v987 = vrcp.pop %v986
    %v988 = vmul.f32 1.0, %v987
    %v989 = vtanh.pop %v982
    %v990 = vmul.f32 %v988, %v895
    %992 = vrot.lane.b32.xlu0 %v989, 64
    %v993 = vpop.permute.xlu0 %992
    %v995 = vmul.f32 %v988, %v993
    %997 = vrot.lane.b32.xlu0 %v995, 32
    %v998 = vpop.permute.xlu0 %997
    %v1000 = vadd.f32 %v990, %v998
    %v1001 = vtanh.pop %v1000
    %1003 = vrot.lane.b32.xlu0 %v1001, 64
    %v1004 = vpop.permute.xlu0 %1003
    %v1006 = vmul.f32 %v988, %v1004
    %v1007 = vrot.slane %v376, 7
    %v1009 = vrot.slane %v481, 6
    %v1011 = vrot.slane %v586, 5
    %v1013 = vrot.slane %v691, 4
    %v1015 = vrot.slane %v796, 3
    %v1017 = vrot.slane %v901, 2
    %v1020 = vrot.slane %v1006, 1
    %v1022 = vsel %vm246, %v271, %v1007
    %vm1023 = vcmask 1041408
    %v1024 = vsel %vm1023, %v1022, %v1009
    %vm1025 = vcmask 1042432
    %v1026 = vsel %vm1025, %v1024, %v1011
    %vm1027 = vcmask 1043456
    %v1028 = vsel %vm1027, %v1026, %v1013
    %vm1029 = vcmask 1044480
    %v1030 = vsel %vm1029, %v1028, %v1015
    %vm1031 = vcmask 1045504
    %v1032 = vsel %vm1031, %v1030, %v1017
    %vm1033 = vcmask 1046528
    %v1034 = vsel %vm1033, %v1032, %v1020
    %v1035 = vrot.slane %v796, 7
    %v1037 = vrot.slane %v691, 6
    %v1039 = vrot.slane %v481, 4
    %v1041 = vrot.slane %v376, 3
    %v1043 = vrot.slane %v271, 2
    %v1045 = vsel %vm246, %v1020, %v901
    %v1046 = vsel %vm1023, %v1045, %v1035
    %v1047 = vsel %vm1025, %v1046, %v1037
    %v1048 = vsel %vm1027, %v1047, %v1011
    %v1049 = vsel %vm1029, %v1048, %v1039
    %v1050 = vsel %vm1031, %v1049, %v1041
    %v1051 = vsel %vm1033, %v1050, %v1043
    %1053 = vrot.lane.b32.xlu0 %v1034, 32
    %v1054 = vpop.permute.xlu0 %1053
    %1056 = vst.msk [vmem:[#allocation9] sm:$0xff] %vm167, %v1054
    %1058 = vrot.lane.b32.xlu0 %v1051, 64
    %v1059 = vpop.permute.xlu0 %1058
    %vm1061 = vcmask 523520
    %1062 = vst.msk [vmem:[#allocation9] sm:$0xff] %vm1061, %v1059
    // Predicated region
    $region30: #{tpu_custom_call.1} parent=1 // pred_check
      _
    $region31: #{tpu_custom_call.1} parent=1 // pred_check_branch
      %1064 = sbr.rel (0) target = $region33
    $region32: #{tpu_custom_call.1} parent=1 // pred_region
      %s1066 = ssub.s32 128, 128
      %1067 = vsyncadd [#allocation5], %s1066
      %s1069 = sshll.u32 [#allocation9], 4
      %s1070 = int_to_ptr.vmem [resolvable:$true] %s1069
      %1072 = dma.vmem_to_hbm [thread:$0]  %s1070, 128, %s4, [#allocation5]
    $region33: #{tpu_custom_call.1} parent=1 // pred_fallthru
      _
    // Predicated region
    $region34: #{tpu_custom_call.1} parent=1 // pred_check
      _
    $region35: #{tpu_custom_call.1} parent=1 // pred_check_branch
      %1074 = sbr.rel (0) target = $region37
    $region36: #{tpu_custom_call.1} parent=1 // pred_region
      %1075 = dma.done [#allocation5], 128
    $region37: #{tpu_custom_call.1} parent=1 // pred_fallthru
      _
    %1076 = vsyncpa [#allocation4], 1
    %1077 = vsyncpa [#allocation7], 1
    %1078 = vsyncpa [#allocation5], 1

</llo_original>
